<compile_context>
chip_gen: v6e
topology: v6e:2x2x1
jax: 0.10.0
libtpu: 0.0.40
codegen_flags: <defaults>
</compile_context>

<pallas_src>
import functools
import math

import jax
import jax.numpy as jnp
from jax.experimental import pallas as pl
from jax.experimental.pallas import tpu as pltpu


# ----------------------------------------------------------------------------
# Token-tile selection (pad once per forward; lane/sublane aligned tiles)
# ----------------------------------------------------------------------------
def _round_up(x, m):
    return (x + m - 1) // m * m


def _choose_tm(m, max_tm=256, min_tm=128, step=128):
    """Token tile: multiple of 128, <= max_tm (v7x 64 MiB VMEM headroom), minimizing pad,
    preferring >= 4 grid steps so both v7x TensorCores get a pipelined grid."""
    best_tm, best_score = None, None
    for tm in range(min_tm, max_tm + 1, step):
        mp = _round_up(max(m, tm), tm)
        pad = mp - m
        steps = mp // tm
        score = (pad, 0 if steps >= 4 else 1, -tm)
        if best_score is None or score < best_score:
            best_tm, best_score = tm, score
    return best_tm


# ----------------------------------------------------------------------------
# Pallas kernel A: fused query-side projections + masked value + grouped softmax
# ----------------------------------------------------------------------------
def _fused_qproj_kernel(q_ref, p_ref, m_ref, wv_ref, bv_ref, woff_ref, boff_ref,
                        wattn_ref, battn_ref, gf_ref, gb_ref,
                        val_ref, off_ref, attn_ref):
    q16 = q_ref[...].astype(jnp.bfloat16)
    qp16 = q16 + p_ref[...]                          # query + query_pos (query_pos is bf16)

    # value projection on the ORIGINAL query; zero padded keys inside the kernel (bf16 out)
    val = jnp.dot(q16, wv_ref[...], preferred_element_type=jnp.float32) + bv_ref[...]
    val = jnp.where(m_ref[...] > 0.5, 0.0, val)      # m_ref: [TM, 1] (1.0 = padded)
    val_ref[...] = val.astype(val_ref.dtype)

    # sampling offsets (f32 — they feed sampling-location arithmetic)
    off_ref[...] = (jnp.dot(qp16, woff_ref[...], preferred_element_type=jnp.float32)
                    + boff_ref[...])

    # attention-weight logits + grouped softmax (one group of nL*nP columns per head).
    # Row-max shift is softmax-shift-invariant per group; per-head sums come from a tiny
    # [Dattn, nH] indicator matmul (precomputed in the wrapper), broadcast back with its
    # transpose.  Exact division with a clamped denominator keeps it NaN-safe.
    logits = (jnp.dot(qp16, wattn_ref[...], preferred_element_type=jnp.float32)
              + battn_ref[...])
    rmax = jnp.max(logits, axis=-1, keepdims=True)
    e = jnp.exp(logits - rmax)
    gsum = jnp.dot(e, gf_ref[...], preferred_element_type=jnp.float32)       # [TM, nH]
    inv = 1.0 / jnp.maximum(gsum, 1e-20)
    inv_full = jnp.dot(inv, gb_ref[...], preferred_element_type=jnp.float32) # [TM, Dattn]
    attn_ref[...] = (e * inv_full).astype(attn_ref.dtype)


def fused_qproj_pallas(q, p, m, wv, bv, woff, boff, wattn, battn, gf, gb, *, tm):
    """q: [Mp, C] f32; p: [Mp, C] bf16; m: [Mp, 1] f32; weights in bf16; gf/gb f32."""
    Mp, C = q.shape
    Doff = woff.shape[1]
    Dattn = wattn.shape[1]
    nH = gf.shape[1]
    return pl.pallas_call(
        _fused_qproj_kernel,
        out_shape=(jax.ShapeDtypeStruct((Mp, C), jnp.bfloat16),      # value (bf16)
                   jax.ShapeDtypeStruct((Mp, Doff), jnp.float32),    # sampling offsets
                   jax.ShapeDtypeStruct((Mp, Dattn), jnp.bfloat16)), # attention weights (bf16)
        grid_spec=pltpu.PrefetchScalarGridSpec(
            num_scalar_prefetch=0,
            grid=(Mp // tm,),
            in_specs=[
                pl.BlockSpec((tm, C), lambda i: (i, 0)),       # query (f32)
                pl.BlockSpec((tm, C), lambda i: (i, 0)),       # query_pos (bf16)
                pl.BlockSpec((tm, 1), lambda i: (i, 0)),       # key_padding_mask
                pl.BlockSpec((C, C), lambda i: (0, 0)),        # value_proj w (bf16)
                pl.BlockSpec((1, C), lambda i: (0, 0)),        # value_proj b
                pl.BlockSpec((C, Doff), lambda i: (0, 0)),     # sampling_offsets w (bf16)
                pl.BlockSpec((1, Doff), lambda i: (0, 0)),     # sampling_offsets b
                pl.BlockSpec((C, Dattn), lambda i: (0, 0)),    # attention_weights w (bf16)
                pl.BlockSpec((1, Dattn), lambda i: (0, 0)),    # attention_weights b
                pl.BlockSpec((Dattn, nH), lambda i: (0, 0)),   # group-sum indicator (hoisted)
                pl.BlockSpec((nH, Dattn), lambda i: (0, 0)),   # its transpose (broadcast-back)
            ],
            out_specs=[
                pl.BlockSpec((tm, C), lambda i: (i, 0)),
                pl.BlockSpec((tm, Doff), lambda i: (i, 0)),
                pl.BlockSpec((tm, Dattn), lambda i: (i, 0)),
            ],
        ),
        compiler_params=pltpu.CompilerParams(
            dimension_semantics=("parallel",),
            vmem_limit_bytes=32 * 1024 * 1024),
    )(q, p, m, wv, bv, woff, boff, wattn, battn, gf, gb)


# ----------------------------------------------------------------------------
# Pallas kernel B: out_proj + residual + LN1 + FFN + residual + LN2 (fully fused)
# ----------------------------------------------------------------------------
def _fused_post_kernel(a_ref, q_ref, wo_ref, bo_ref, g1_ref, be1_ref,
                       w1_ref, b1_ref, w2_ref, b2_ref, g2_ref, be2_ref, o_ref, *, eps):
    # output projection of the deformable-attention result (a_ref is bf16; f32 accumulate)
    attn_out = jnp.dot(a_ref[...], wo_ref[...],
                       preferred_element_type=jnp.float32) + bo_ref[...]
    x = attn_out + q_ref[...]                          # residual 1
    mean = jnp.mean(x, axis=-1, keepdims=True)
    xc = x - mean
    var = jnp.mean(xc * xc, axis=-1, keepdims=True)
    q1 = xc * jax.lax.rsqrt(var + eps) * g1_ref[...] + be1_ref[...]   # LayerNorm 1 (f32)

    # FFN — hidden activation [TM, Fd] stays in VMEM / vregs, never touches HBM
    h = jnp.dot(q1.astype(jnp.bfloat16), w1_ref[...],
                preferred_element_type=jnp.float32) + b1_ref[...]
    h = jnp.maximum(h, 0.0)
    f = jnp.dot(h.astype(jnp.bfloat16), w2_ref[...],
                preferred_element_type=jnp.float32) + b2_ref[...]

    y = f + q1                                         # residual 2
    mean2 = jnp.mean(y, axis=-1, keepdims=True)
    yc = y - mean2
    var2 = jnp.mean(yc * yc, axis=-1, keepdims=True)
    o_ref[...] = (yc * jax.lax.rsqrt(var2 + eps) * g2_ref[...] + be2_ref[...]).astype(o_ref.dtype)


def fused_post_pallas(a, q, wo, bo, g1, be1, w1, b1, w2, b2, g2, be2, *, tm, eps):
    Mp, C = q.shape
    Fd = w1.shape[1]
    # TODO(synk): at production sizes (C~256, Fd~1024-2048) on v7x (64 MiB VMEM), tile the Fd
    # axis (fori_loop over Fd chunks with a [TM, C] accumulator for FFN2) instead of keeping
    # the FFN weights as single resident blocks; at these sizes they are a few hundred KiB.
    return pl.pallas_call(
        functools.partial(_fused_post_kernel, eps=eps),
        out_shape=jax.ShapeDtypeStruct((Mp, C), jnp.float32),
        grid_spec=pltpu.PrefetchScalarGridSpec(
            num_scalar_prefetch=0,
            grid=(Mp // tm,),
            in_specs=[
                pl.BlockSpec((tm, C), lambda i: (i, 0)),   # msda core output (bf16)
                pl.BlockSpec((tm, C), lambda i: (i, 0)),   # residual query (f32)
                pl.BlockSpec((C, C), lambda i: (0, 0)),    # out_proj w (bf16)
                pl.BlockSpec((1, C), lambda i: (0, 0)),    # out_proj b
                pl.BlockSpec((1, C), lambda i: (0, 0)),    # ln1 gamma
                pl.BlockSpec((1, C), lambda i: (0, 0)),    # ln1 beta
                pl.BlockSpec((C, Fd), lambda i: (0, 0)),   # ffn1 w (bf16)
                pl.BlockSpec((1, Fd), lambda i: (0, 0)),   # ffn1 b
                pl.BlockSpec((Fd, C), lambda i: (0, 0)),   # ffn2 w (bf16)
                pl.BlockSpec((1, C), lambda i: (0, 0)),    # ffn2 b
                pl.BlockSpec((1, C), lambda i: (0, 0)),    # ln2 gamma
                pl.BlockSpec((1, C), lambda i: (0, 0)),    # ln2 beta
            ],
            out_specs=pl.BlockSpec((tm, C), lambda i: (i, 0)),
        ),
        compiler_params=pltpu.CompilerParams(
            dimension_semantics=("parallel",),
            vmem_limit_bytes=32 * 1024 * 1024),
    )(a, q, wo, bo, g1, be1, w1, b1, w2, b2, g2, be2)


# ----------------------------------------------------------------------------
# Plain-JAX glue (mask building, pos-embed, reference points, bilinear sampling)
# ----------------------------------------------------------------------------
def interpolate_nearest(x, out_h, out_w):
    """F.interpolate(mode='nearest') on [B, H, W]."""
    B, H, W = x.shape
    idx_h = jnp.floor(jnp.arange(out_h) * (H / out_h)).astype(jnp.int32)
    idx_w = jnp.floor(jnp.arange(out_w) * (W / out_w)).astype(jnp.int32)
    return x[:, idx_h][:, :, idx_w]


def get_valid_ratio(mask):
    """mask: [B, H, W] bool, True = padded. Returns [B, 2] = (ratio_w, ratio_h)."""
    H, W = mask.shape[1], mask.shape[2]
    valid_H = jnp.sum(~mask[:, :, 0], axis=1).astype(jnp.float32)
    valid_W = jnp.sum(~mask[:, 0, :], axis=1).astype(jnp.float32)
    return jnp.stack([valid_W / W, valid_H / H], axis=-1)


def sine_pos_embed(pad_mask, num_feats, temperature=10000.0, scale=2 * math.pi, eps=1e-6):
    """Sine positional encoding from a padding mask; returns [B, 2*num_feats, H, W]."""
    B, H, W = pad_mask.shape
    not_mask = (~pad_mask).astype(jnp.float32)
    y_embed = jnp.cumsum(not_mask, axis=1)
    x_embed = jnp.cumsum(not_mask, axis=2)
    y_embed = y_embed / (y_embed[:, -1:, :] + eps) * scale
    x_embed = x_embed / (x_embed[:, :, -1:] + eps) * scale
    dim_t = jnp.arange(num_feats, dtype=jnp.float32)
    dim_t = temperature ** (2.0 * jnp.floor(dim_t / 2.0) / num_feats)
    pos_x = x_embed[..., None] / dim_t
    pos_y = y_embed[..., None] / dim_t
    pos_x = jnp.stack([jnp.sin(pos_x[..., 0::2]), jnp.cos(pos_x[..., 1::2])],
                      axis=4).reshape(B, H, W, -1)
    pos_y = jnp.stack([jnp.sin(pos_y[..., 0::2]), jnp.cos(pos_y[..., 1::2])],
                      axis=4).reshape(B, H, W, -1)
    pos = jnp.concatenate([pos_y, pos_x], axis=3)
    return pos.transpose(0, 3, 1, 2)


def get_reference_points(spatial_shapes_list, valid_ratios):
    ref_list = []
    # clamp protects against fully-padded images (valid ratio 0) producing inf/NaN
    vr = jnp.maximum(valid_ratios, 1e-6)
    for lvl, (H, W) in enumerate(spatial_shapes_list):
        ry, rx = jnp.meshgrid(jnp.linspace(0.5, H - 0.5, H),
                              jnp.linspace(0.5, W - 0.5, W), indexing="ij")
        ry = ry.reshape(-1)[None] / (vr[:, None, lvl, 1] * H)
        rx = rx.reshape(-1)[None] / (vr[:, None, lvl, 0] * W)
        ref_list.append(jnp.stack((rx, ry), axis=-1))
    reference_points = jnp.concatenate(ref_list, axis=1)        # [B, L, 2]
    return reference_points[:, :, None] * valid_ratios[:, None]  # [B, L, nL, 2]


# TODO(synk): the bilinear grid-sample gather is data-dependent indexing; the proper Pallas
# form is scalar-prefetched flat corner indices driving manual make_async_copy row-gathers
# (with value emitted head-major from Kernel A).  For now it stays in plain JAX but does a
# single batched 4-corner take_along_axis + one einsum per level, with no value transposes
# and a token-major output (no final transpose).
def ms_deform_attn_core(value, spatial_shapes_list, sampling_locations, attention_weights):
    """value [B,Lv,nH,Dh] (bf16); locs [B,Lq,nH,nL,P,2] in [0,1]; weights [B,Lq,nH,nL,P]."""
    B, Lv, nH, Dh = value.shape
    _, Lq, _, nL, nP, _ = sampling_locations.shape
    out = jnp.zeros((B, Lq, nH, Dh), jnp.float32)
    start = 0
    for lvl, (H, W) in enumerate(spatial_shapes_list):
        v_lvl = value[:, start:start + H * W]                    # [B, HW, nH, Dh]
        start += H * W
        loc = sampling_locations[:, :, :, lvl]                   # [B, Lq, nH, P, 2]
        aw = attention_weights[:, :, :, lvl]                     # [B, Lq, nH, P]
        x = loc[..., 0] * W - 0.5
        y = loc[..., 1] * H - 0.5
        x0 = jnp.floor(x); y0 = jnp.floor(y)
        x1 = x0 + 1.0;     y1 = y0 + 1.0
        wx1 = x - x0; wx0 = 1.0 - wx1
        wy1 = y - y0; wy0 = 1.0 - wy1

        # stack the 4 bilinear corners -> ONE gather + ONE einsum per level
        cx = jnp.stack([x0, x1, x0, x1], axis=-1)                # [B, Lq, nH, P, 4]
        cy = jnp.stack([y0, y0, y1, y1], axis=-1)
        cw = jnp.stack([wx0 * wy0, wx1 * wy0, wx0 * wy1, wx1 * wy1], axis=-1)
        valid = ((cx >= 0) & (cx <= W - 1) & (cy >= 0) & (cy <= H - 1)).astype(jnp.float32)
        ix = jnp.clip(cx, 0, W - 1).astype(jnp.int32)
        iy = jnp.clip(cy, 0, H - 1).astype(jnp.int32)
        flat = iy * W + ix                                       # [B, Lq, nH, P, 4]
        wgt = cw * valid * aw[..., None]                         # bilinear * inside * attn

        idx = flat.transpose(0, 1, 3, 4, 2).reshape(B, Lq * nP * 4, nH)   # [B, K, nH]
        g = jnp.take_along_axis(v_lvl, idx[..., None], axis=1)            # [B, K, nH, Dh]
        g = g.reshape(B, Lq, nP, 4, nH, Dh).astype(jnp.float32)
        wgt_t = wgt.transpose(0, 1, 3, 4, 2)                              # [B, Lq, P, 4, nH]
        out = out + jnp.einsum('blpch,blpchd->blhd', wgt_t, g)
    return out.reshape(B, Lq, nH * Dh)


# ----------------------------------------------------------------------------
# Parameter init (deterministic, mirroring the PyTorch __init__ / init_weights)
# ----------------------------------------------------------------------------
def xavier_uniform_io(key, cin, cout):
    bound = math.sqrt(6.0 / (cin + cout))
    return jax.random.uniform(key, (cin, cout), jnp.float32, -bound, bound)


def default_linear_bias(key, fan_in, cout):
    bound = 1.0 / math.sqrt(fan_in)
    return jax.random.uniform(key, (cout,), jnp.float32, -bound, bound)


def msda_sampling_offset_bias(num_heads, num_levels, num_points):
    thetas = jnp.arange(num_heads, dtype=jnp.float32) * (2.0 * math.pi / num_heads)
    grid = jnp.stack([jnp.cos(thetas), jnp.sin(thetas)], axis=-1)
    grid = grid / jnp.max(jnp.abs(grid), axis=-1, keepdims=True)
    grid = jnp.tile(grid[:, None, None, :], (1, num_levels, num_points, 1))
    grid = grid * jnp.arange(1, num_points + 1, dtype=jnp.float32)[None, None, :, None]
    return grid.reshape(-1)


def init_params(key, cfg):
    C, nH, nL, nP = cfg["feat_size"], cfg["num_heads"], cfg["num_levels"], cfg["num_points"]
    Fd, n_layers = cfg["ffn_dim"], cfg["num_layers"]
    Doff, Dattn = nH * nL * nP * 2, nH * nL * nP
    keys = iter(jax.random.split(key, 1 + n_layers * 6))
    params = {"lvl_embed": jax.random.normal(next(keys), (nL, C), jnp.float32), "layers": []}
    for _ in range(n_layers):
        lp = {
            # MultiScaleDeformableAttention after init_weights(); matmul weights in bf16.
            "value_proj_w": xavier_uniform_io(next(keys), C, C).astype(jnp.bfloat16),
            "value_proj_b": jnp.zeros((C,), jnp.float32),
            # sampling_offsets: zero weight, directional bias; attention_weights: all zero.
            "samp_off_w": jnp.zeros((C, Doff), jnp.bfloat16),
            "samp_off_b": msda_sampling_offset_bias(nH, nL, nP),
            "attn_w_w": jnp.zeros((C, Dattn), jnp.bfloat16),
            "attn_w_b": jnp.zeros((Dattn,), jnp.float32),
            "out_proj_w": xavier_uniform_io(next(keys), C, C).astype(jnp.bfloat16),
            "out_proj_b": jnp.zeros((C,), jnp.float32),
            # FFN (weights xavier'd by DeformEncoder __init__, biases keep nn.Linear default):
            "ffn1_w": xavier_uniform_io(next(keys), C, Fd).astype(jnp.bfloat16),
            "ffn1_b": default_linear_bias(next(keys), C, Fd),
            "ffn2_w": xavier_uniform_io(next(keys), Fd, C).astype(jnp.bfloat16),
            "ffn2_b": default_linear_bias(next(keys), Fd, C),
            # LayerNorms (f32):
            "norm1_g": jnp.ones((C,), jnp.float32), "norm1_b": jnp.zeros((C,), jnp.float32),
            "norm2_g": jnp.ones((C,), jnp.float32), "norm2_b": jnp.zeros((C,), jnp.float32),
        }
        params["layers"].append(lp)
    return params


# ----------------------------------------------------------------------------
# Encoder layer / full forward
# ----------------------------------------------------------------------------
def encoder_layer(lp, q_pad, e_pad, m_pad, gf, gb, reference_points, spatial_shapes_list,
                  B, Lq, tm, nH, nP, eps=1e-5):
    Mp, C = q_pad.shape
    nL = len(spatial_shapes_list)
    Dh = C // nH
    Doff = nH * nL * nP * 2
    Dattn = nH * nL * nP
    M = B * Lq

    # Kernel A: value_proj(+mask) | sampling_offsets | softmax(attention_weights)
    val, off, attn = fused_qproj_pallas(
        q_pad, e_pad, m_pad,
        lp["value_proj_w"], lp["value_proj_b"].reshape(1, C),
        lp["samp_off_w"], lp["samp_off_b"].reshape(1, Doff),
        lp["attn_w_w"], lp["attn_w_b"].reshape(1, Dattn),
        gf, gb, tm=tm)
    if Mp != M:                                  # usually a no-op: tm chosen so Mp == M
        val, off, attn = val[:M], off[:M], attn[:M]

    value = val.reshape(B, Lq, nH, Dh)
    offsets = off.reshape(B, Lq, nH, nL, nP, 2)
    attn_w = attn.reshape(B, Lq, nH, nL, nP)

    shapes = jnp.array(spatial_shapes_list, jnp.float32)
    offset_normalizer = jnp.stack([shapes[:, 1], shapes[:, 0]], axis=-1)       # (W, H)
    sampling_locations = (reference_points[:, :, None, :, None, :]
                          + offsets / offset_normalizer[None, None, None, :, None, :])

    core = ms_deform_attn_core(value, spatial_shapes_list, sampling_locations, attn_w)
    core16 = core.reshape(M, C).astype(jnp.bfloat16)
    if Mp != M:
        core16 = jnp.pad(core16, ((0, Mp - M), (0, 0)))

    # Kernel B: out_proj + residual + LN1 + FFN + residual + LN2
    return fused_post_pallas(
        core16, q_pad,
        lp["out_proj_w"], lp["out_proj_b"].reshape(1, C),
        lp["norm1_g"].reshape(1, C), lp["norm1_b"].reshape(1, C),
        lp["ffn1_w"], lp["ffn1_b"].reshape(1, -1),
        lp["ffn2_w"], lp["ffn2_b"].reshape(1, C),
        lp["norm2_g"].reshape(1, C), lp["norm2_b"].reshape(1, C),
        tm=tm, eps=eps)


def deform_encoder_forward(params, cfg, in_feat_maps, img_size, img_sizes_wo_pad):
    B = in_feat_maps[0].shape[0]
    C = cfg["feat_size"]
    nH, nL, nP = cfg["num_heads"], cfg["num_levels"], cfg["num_points"]
    iW, iH = img_size
    base_pad_mask = jnp.ones((B, iH, iW), jnp.float32)
    for i, (w, h) in enumerate(img_sizes_wo_pad):
        base_pad_mask = base_pad_mask.at[i, :h, :w].set(0.0)

    feats_list, embeds_list, masks_list = [], [], []
    spatial_shapes_list, valid_ratios_list = [], []
    for i, fmap in enumerate(in_feat_maps):
        _, _, fH, fW = fmap.shape
        feats = fmap.reshape(B, C, fH * fW).transpose(0, 2, 1)
        pad_mask = interpolate_nearest(base_pad_mask, fH, fW) > 0.0
        embeds = sine_pos_embed(pad_mask, C // 2).reshape(B, C, fH * fW).transpose(0, 2, 1)
        embeds = embeds + params["lvl_embed"][i]
        feats_list.append(feats)
        embeds_list.append(embeds)
        masks_list.append(pad_mask.reshape(B, fH * fW))
        spatial_shapes_list.append((fH, fW))
        valid_ratios_list.append(get_valid_ratio(pad_mask))

    feats = jnp.concatenate(feats_list, axis=1)                    # [B, Lq, C]
    embeds = jnp.concatenate(embeds_list, axis=1)
    pad_mask = jnp.concatenate(masks_list, axis=1)                 # [B, Lq] bool
    valid_ratios = jnp.stack(valid_ratios_list, axis=1)            # [B, nL, 2]
    reference_points = get_reference_points(spatial_shapes_list, valid_ratios)

    Lq = feats.shape[1]
    M = B * Lq
    tm = _choose_tm(M)
    Mp = _round_up(M, tm)
    pad = Mp - M

    # Pad ONCE per forward; pad rows stay padded across all layers (finite garbage, sliced off).
    q_pad = jnp.pad(feats.reshape(M, C), ((0, pad), (0, 0)))
    e_pad = jnp.pad(embeds.reshape(M, C), ((0, pad), (0, 0))).astype(jnp.bfloat16)
    m_pad = jnp.pad(pad_mask.reshape(M, 1).astype(jnp.float32),
                    ((0, pad), (0, 0)), constant_values=1.0)

    # grouped-softmax indicator matrices, hoisted out of the kernel (constant per forward)
    group = nL * nP
    head_of_col = jnp.arange(nH * group) // group
    gf = (head_of_col[:, None] == jnp.arange(nH)[None, :]).astype(jnp.float32)  # [Dattn, nH]
    gb = gf.T                                                                   # [nH, Dattn]

    for lp in params["layers"]:
        q_pad = encoder_layer(lp, q_pad, e_pad, m_pad, gf, gb, reference_points,
                              spatial_shapes_list, B, Lq, tm, nH, nP)

    query = q_pad[:M].reshape(B, Lq, C)
    out_maps, start = [], 0
    for (fH, fW) in spatial_shapes_list:
        seg = query[:, start:start + fH * fW]
        start += fH * fW
        out_maps.append(seg.transpose(0, 2, 1).reshape(B, C, fH, fW))
    return out_maps


# ----------------------------------------------------------------------------
if __name__ == "__main__":
    # C=128 keeps the [TM, C] blocks lane-dense (128 lanes) and the MXU contraction aligned.
    cfg = dict(feat_size=128, num_heads=8, num_levels=2, num_points=4,
               ffn_dim=256, num_layers=2)

    key = jax.random.PRNGKey(0)
    k_param, k_f0, k_f1 = jax.random.split(key, 3)
    params = init_params(k_param, cfg)

    batch = 2
    # input feature maps (NCHW), two pyramid levels
    feat0 = jax.random.normal(k_f0, (batch, cfg["feat_size"], 16, 16), jnp.float32)
    feat1 = jax.random.normal(k_f1, (batch, cfg["feat_size"], 8, 8), jnp.float32)
    in_feat_maps = [feat0, feat1]

    img_size = (64, 64)                      # padded (iW, iH)
    img_sizes_wo_pad = [(64, 64), (48, 56)]  # per-image (iW, iH) without padding

    out_maps = deform_encoder_forward(params, cfg, in_feat_maps, img_size, img_sizes_wo_pad)
    out_maps = [jax.block_until_ready(o) for o in out_maps]

    assert out_maps[0].shape == feat0.shape and out_maps[1].shape == feat1.shape
    assert all(bool(jnp.all(jnp.isfinite(o))) for o in out_maps)
    print("KERNEL_OK")
</pallas_src>

<mosaic_0001>
module attributes {stable_mosaic.version = 11 : i64} {
  func.func @_fused_qproj_kernel(%arg0: i32, %arg1: memref<128x128xf32, #tpu.memory_space<vmem>>, %arg2: memref<128x128xbf16, #tpu.memory_space<vmem>>, %arg3: memref<128x1xf32, #tpu.memory_space<vmem>>, %arg4: memref<128x128xbf16, #tpu.memory_space<vmem>>, %arg5: memref<1x128xf32, #tpu.memory_space<vmem>>, %arg6: memref<128x128xbf16, #tpu.memory_space<vmem>>, %arg7: memref<1x128xf32, #tpu.memory_space<vmem>>, %arg8: memref<128x64xbf16, #tpu.memory_space<vmem>>, %arg9: memref<1x64xf32, #tpu.memory_space<vmem>>, %arg10: memref<64x8xf32, #tpu.memory_space<vmem>>, %arg11: memref<8x64xf32, #tpu.memory_space<vmem>>, %arg12: memref<128x128xbf16, #tpu.memory_space<vmem>>, %arg13: memref<128x128xf32, #tpu.memory_space<vmem>>, %arg14: memref<128x64xbf16, #tpu.memory_space<vmem>>) attributes {dimension_semantics = [#tpu.dimension_semantics<parallel>], iteration_bounds = array<i64: 5>, scalar_prefetch = 0 : i64, scratch_operands = 0 : i64, tpu.core_type = #tpu.core_type<tc>, window_params = [{transform_indices = @transform_0, window_bounds = array<i64: 128, 128>}, {transform_indices = @transform_1, window_bounds = array<i64: 128, 128>}, {transform_indices = @transform_2, window_bounds = array<i64: 128, 1>}, {pipeline_mode = #tpu.pipeline_mode<synchronous>, transform_indices = @transform_3, window_bounds = array<i64: 128, 128>}, {pipeline_mode = #tpu.pipeline_mode<synchronous>, transform_indices = @transform_4, window_bounds = array<i64: 1, 128>}, {pipeline_mode = #tpu.pipeline_mode<synchronous>, transform_indices = @transform_5, window_bounds = array<i64: 128, 128>}, {pipeline_mode = #tpu.pipeline_mode<synchronous>, transform_indices = @transform_6, window_bounds = array<i64: 1, 128>}, {pipeline_mode = #tpu.pipeline_mode<synchronous>, transform_indices = @transform_7, window_bounds = array<i64: 128, 64>}, {pipeline_mode = #tpu.pipeline_mode<synchronous>, transform_indices = @transform_8, window_bounds = array<i64: 1, 64>}, {pipeline_mode = #tpu.pipeline_mode<synchronous>, transform_indices = @transform_9, window_bounds = array<i64: 64, 8>}, {pipeline_mode = #tpu.pipeline_mode<synchronous>, transform_indices = @transform_10, window_bounds = array<i64: 8, 64>}, {transform_indices = @transform_11, window_bounds = array<i64: 128, 128>}, {transform_indices = @transform_12, window_bounds = array<i64: 128, 128>}, {transform_indices = @transform_13, window_bounds = array<i64: 128, 64>}]} {
    %c0 = arith.constant 0 : index
    %c0_0 = arith.constant 0 : index
    %0 = vector.load %arg1[%c0, %c0_0] : memref<128x128xf32, #tpu.memory_space<vmem>>, vector<128x128xf32>
    %1 = arith.truncf %0 : vector<128x128xf32> to vector<128x128xbf16>
    %c0_1 = arith.constant 0 : index
    %c0_2 = arith.constant 0 : index
    %2 = vector.load %arg2[%c0_1, %c0_2] : memref<128x128xbf16, #tpu.memory_space<vmem>>, vector<128x128xbf16>
    %3 = arith.addf %1, %2 : vector<128x128xbf16>
    %c0_3 = arith.constant 0 : index
    %c0_4 = arith.constant 0 : index
    %4 = vector.load %arg4[%c0_3, %c0_4] : memref<128x128xbf16, #tpu.memory_space<vmem>>, vector<128x128xbf16>
    %cst = arith.constant dense<0.000000e+00> : vector<128x128xf32>
    %5 = tpu.matmul %1, %4, %cst {dimension_numbers = #tpu.dot_dimension_numbers<[1], [0], [0], [1], [0, 0, 1, 1], [], []>} : vector<128x128xbf16>, vector<128x128xbf16>, vector<128x128xf32> -> vector<128x128xf32>
    %c0_5 = arith.constant 0 : index
    %c0_6 = arith.constant 0 : index
    %6 = vector.load %arg5[%c0_5, %c0_6] : memref<1x128xf32, #tpu.memory_space<vmem>>, vector<1x128xf32>
    %7 = vector.broadcast %6 : vector<1x128xf32> to vector<128x128xf32>
    %8 = arith.addf %5, %7 : vector<128x128xf32>
    %c0_7 = arith.constant 0 : index
    %c0_8 = arith.constant 0 : index
    %9 = vector.load %arg3[%c0_7, %c0_8] : memref<128x1xf32, #tpu.memory_space<vmem>>, vector<128x1xf32>
    %cst_9 = arith.constant 5.000000e-01 : f32
    %10 = vector.broadcast %cst_9 : f32 to vector<128x1xf32>
    %11 = arith.cmpf ogt, %9, %10 : vector<128x1xf32>
    %cst_10 = arith.constant 0.000000e+00 : f32
    %12 = vector.shape_cast %11 : vector<128x1xi1> to vector<128x1xi1>
    %13 = vector.broadcast %12 : vector<128x1xi1> to vector<128x128xi1>
    %14 = vector.broadcast %cst_10 : f32 to vector<128x128xf32>
    %15 = arith.select %13, %14, %8 : vector<128x128xi1>, vector<128x128xf32>
    %16 = arith.truncf %15 : vector<128x128xf32> to vector<128x128xbf16>
    %c0_11 = arith.constant 0 : index
    %c0_12 = arith.constant 0 : index
    %17 = vector.load %arg12[%c0_11, %c0_12] : memref<128x128xbf16, #tpu.memory_space<vmem>>, vector<128x128xbf16>
    tpu.vector_store %arg12[%c0_11, %c0_12], %16 {strides = array<i32>} : memref<128x128xbf16, #tpu.memory_space<vmem>>, vector<128x128xbf16>,
    %c0_13 = arith.constant 0 : index
    %c0_14 = arith.constant 0 : index
    %18 = vector.load %arg6[%c0_13, %c0_14] : memref<128x128xbf16, #tpu.memory_space<vmem>>, vector<128x128xbf16>
    %cst_15 = arith.constant dense<0.000000e+00> : vector<128x128xf32>
    %19 = tpu.matmul %3, %18, %cst_15 {dimension_numbers = #tpu.dot_dimension_numbers<[1], [0], [0], [1], [0, 0, 1, 1], [], []>} : vector<128x128xbf16>, vector<128x128xbf16>, vector<128x128xf32> -> vector<128x128xf32>
    %c0_16 = arith.constant 0 : index
    %c0_17 = arith.constant 0 : index
    %20 = vector.load %arg7[%c0_16, %c0_17] : memref<1x128xf32, #tpu.memory_space<vmem>>, vector<1x128xf32>
    %21 = vector.broadcast %20 : vector<1x128xf32> to vector<128x128xf32>
    %22 = arith.addf %19, %21 : vector<128x128xf32>
    %c0_18 = arith.constant 0 : index
    %c0_19 = arith.constant 0 : index
    %23 = vector.load %arg13[%c0_18, %c0_19] : memref<128x128xf32, #tpu.memory_space<vmem>>, vector<128x128xf32>
    tpu.vector_store %arg13[%c0_18, %c0_19], %22 {strides = array<i32>} : memref<128x128xf32, #tpu.memory_space<vmem>>, vector<128x128xf32>,
    %c0_20 = arith.constant 0 : index
    %c0_21 = arith.constant 0 : index
    %24 = vector.load %arg8[%c0_20, %c0_21] : memref<128x64xbf16, #tpu.memory_space<vmem>>, vector<128x64xbf16>
    %cst_22 = arith.constant dense<0.000000e+00> : vector<128x64xf32>
    %25 = tpu.matmul %3, %24, %cst_22 {dimension_numbers = #tpu.dot_dimension_numbers<[1], [0], [0], [1], [0, 0, 1, 1], [], []>} : vector<128x128xbf16>, vector<128x64xbf16>, vector<128x64xf32> -> vector<128x64xf32>
    %c0_23 = arith.constant 0 : index
    %c0_24 = arith.constant 0 : index
    %26 = vector.load %arg9[%c0_23, %c0_24] : memref<1x64xf32, #tpu.memory_space<vmem>>, vector<1x64xf32>
    %27 = vector.broadcast %26 : vector<1x64xf32> to vector<128x64xf32>
    %28 = arith.addf %25, %27 : vector<128x64xf32>
    %cst_25 = arith.constant dense<0xFF800000> : vector<128xf32>
    %29 = vector.multi_reduction <maximumf>, %28, %cst_25 [1] : vector<128x64xf32> to vector<128xf32>
    %30 = vector.shape_cast %29 : vector<128xf32> to vector<128x1xf32>
    %31 = vector.broadcast %30 : vector<128x1xf32> to vector<128x64xf32>
    %32 = arith.subf %28, %31 : vector<128x64xf32>
    %33 = math.exp %32 : vector<128x64xf32>
    %c0_26 = arith.constant 0 : index
    %c0_27 = arith.constant 0 : index
    %34 = vector.load %arg10[%c0_26, %c0_27] : memref<64x8xf32, #tpu.memory_space<vmem>>, vector<64x8xf32>
    %cst_28 = arith.constant dense<0.000000e+00> : vector<128x8xf32>
    %35 = tpu.matmul %33, %34, %cst_28 {dimension_numbers = #tpu.dot_dimension_numbers<[1], [0], [0], [1], [0, 0, 1, 1], [], []>} : vector<128x64xf32>, vector<64x8xf32>, vector<128x8xf32> -> vector<128x8xf32>
    %cst_29 = arith.constant 9.99999968E-21 : f32
    %36 = vector.broadcast %cst_29 : f32 to vector<128x8xf32>
    %37 = arith.maximumf %35, %36 : vector<128x8xf32>
    %cst_30 = arith.constant 1.000000e+00 : f32
    %38 = vector.broadcast %cst_30 : f32 to vector<128x8xf32>
    %39 = arith.divf %38, %37 : vector<128x8xf32>
    %c0_31 = arith.constant 0 : index
    %c0_32 = arith.constant 0 : index
    %40 = vector.load %arg11[%c0_31, %c0_32] : memref<8x64xf32, #tpu.memory_space<vmem>>, vector<8x64xf32>
    %cst_33 = arith.constant dense<0.000000e+00> : vector<128x64xf32>
    %41 = tpu.matmul %39, %40, %cst_33 {dimension_numbers = #tpu.dot_dimension_numbers<[1], [0], [0], [1], [0, 0, 1, 1], [], []>} : vector<128x8xf32>, vector<8x64xf32>, vector<128x64xf32> -> vector<128x64xf32>
    %42 = arith.mulf %33, %41 : vector<128x64xf32>
    %43 = arith.truncf %42 : vector<128x64xf32> to vector<128x64xbf16>
    %c0_34 = arith.constant 0 : index
    %c0_35 = arith.constant 0 : index
    %44 = vector.load %arg14[%c0_34, %c0_35] : memref<128x64xbf16, #tpu.memory_space<vmem>>, vector<128x64xbf16>
    tpu.vector_store %arg14[%c0_34, %c0_35], %43 {strides = array<i32>} : memref<128x64xbf16, #tpu.memory_space<vmem>>, vector<128x64xbf16>,
    return
  }
  func.func @transform_0(%arg0: i32) -> (i32, i32) {
    %c0_i32 = arith.constant 0 : i32
    %c0_i32_0 = arith.constant 0 : i32
    return %arg0, %c0_i32 : i32, i32
  }
  func.func @transform_1(%arg0: i32) -> (i32, i32) {
    %c0_i32 = arith.constant 0 : i32
    %c0_i32_0 = arith.constant 0 : i32
    return %arg0, %c0_i32 : i32, i32
  }
  func.func @transform_2(%arg0: i32) -> (i32, i32) {
    %c0_i32 = arith.constant 0 : i32
    %c0_i32_0 = arith.constant 0 : i32
    return %arg0, %c0_i32 : i32, i32
  }
  func.func @transform_3(%arg0: i32) -> (i32, i32) {
    %c0_i32 = arith.constant 0 : i32
    %c0_i32_0 = arith.constant 0 : i32
    %c0_i32_1 = arith.constant 0 : i32
    return %c0_i32, %c0_i32_0 : i32, i32
  }
  func.func @transform_4(%arg0: i32) -> (i32, i32) {
    %c0_i32 = arith.constant 0 : i32
    %c0_i32_0 = arith.constant 0 : i32
    %c0_i32_1 = arith.constant 0 : i32
    return %c0_i32, %c0_i32_0 : i32, i32
  }
  func.func @transform_5(%arg0: i32) -> (i32, i32) {
    %c0_i32 = arith.constant 0 : i32
    %c0_i32_0 = arith.constant 0 : i32
    %c0_i32_1 = arith.constant 0 : i32
    return %c0_i32, %c0_i32_0 : i32, i32
  }
  func.func @transform_6(%arg0: i32) -> (i32, i32) {
    %c0_i32 = arith.constant 0 : i32
    %c0_i32_0 = arith.constant 0 : i32
    %c0_i32_1 = arith.constant 0 : i32
    return %c0_i32, %c0_i32_0 : i32, i32
  }
  func.func @transform_7(%arg0: i32) -> (i32, i32) {
    %c0_i32 = arith.constant 0 : i32
    %c0_i32_0 = arith.constant 0 : i32
    %c0_i32_1 = arith.constant 0 : i32
    return %c0_i32, %c0_i32_0 : i32, i32
  }
  func.func @transform_8(%arg0: i32) -> (i32, i32) {
    %c0_i32 = arith.constant 0 : i32
    %c0_i32_0 = arith.constant 0 : i32
    %c0_i32_1 = arith.constant 0 : i32
    return %c0_i32, %c0_i32_0 : i32, i32
  }
  func.func @transform_9(%arg0: i32) -> (i32, i32) {
    %c0_i32 = arith.constant 0 : i32
    %c0_i32_0 = arith.constant 0 : i32
    %c0_i32_1 = arith.constant 0 : i32
    return %c0_i32, %c0_i32_0 : i32, i32
  }
  func.func @transform_10(%arg0: i32) -> (i32, i32) {
    %c0_i32 = arith.constant 0 : i32
    %c0_i32_0 = arith.constant 0 : i32
    %c0_i32_1 = arith.constant 0 : i32
    return %c0_i32, %c0_i32_0 : i32, i32
  }
  func.func @transform_11(%arg0: i32) -> (i32, i32) {
    %c0_i32 = arith.constant 0 : i32
    %c0_i32_0 = arith.constant 0 : i32
    return %arg0, %c0_i32 : i32, i32
  }
  func.func @transform_12(%arg0: i32) -> (i32, i32) {
    %c0_i32 = arith.constant 0 : i32
    %c0_i32_0 = arith.constant 0 : i32
    return %arg0, %c0_i32 : i32, i32
  }
  func.func @transform_13(%arg0: i32) -> (i32, i32) {
    %c0_i32 = arith.constant 0 : i32
    %c0_i32_0 = arith.constant 0 : i32
    return %arg0, %c0_i32 : i32, i32
  }
}

</mosaic_0001>

<llo_original>
// kernel: tpu_custom_call.1
$region0: #{tpu_custom_call.1}
  #allocation0 [shape = 'u32[]', space=smem, size = 0x4, offset = 0x4, fixed_abs, tag = 'smem constant byte address 0x4 - core index']
  #allocation1 [shape = 'u32[144,128]{1,0:T(1,128)}', space=vmem, size = 0x12000, scoped, tag = 'internal scratch']
  %s0 = inlined_call_operand.vmem [shape: f32[640,128], index: 0, kind: input, shape index: {}]
  %s1 = inlined_call_operand.hbm [shape: bf16[640,128], index: 1, kind: input, shape index: {}]
  %s2 = inlined_call_operand.vmem [shape: f32[640,1], index: 2, kind: input, shape index: {}]
  %s3 = inlined_call_operand.vmem [shape: bf16[128,128], index: 3, kind: input, shape index: {}]
  %s4 = inlined_call_operand.vmem [shape: f32[1,128], index: 4, kind: input, shape index: {}]
  %s5 = inlined_call_operand.vmem [shape: bf16[128,128], index: 5, kind: input, shape index: {}]
  %s6 = inlined_call_operand.vmem [shape: f32[1,128], index: 6, kind: input, shape index: {}]
  %s7 = inlined_call_operand.vmem [shape: bf16[128,64], index: 7, kind: input, shape index: {}]
  %s8 = inlined_call_operand.vmem [shape: f32[1,64], index: 8, kind: input, shape index: {}]
  %s9 = inlined_call_operand.vmem [shape: f32[64,8], index: 9, kind: input, shape index: {}]
  %s10 = inlined_call_operand.vmem [shape: f32[8,64], index: 10, kind: input, shape index: {}]
  %s11 = inlined_call_operand.hbm [shape: bf16[640,128], index: 11, kind: output, shape index: {0}]
  %s12 = inlined_call_operand.hbm [shape: f32[640,128], index: 12, kind: output, shape index: {1}]
  %s13 = inlined_call_operand.vmem [shape: bf16[640,64], index: 13, kind: output, shape index: {2}]
  %14 = xla_tuple %s11, %s12, %s13
  %s15 = sld [smem:[#allocation0]]
  $region97: #{tpu_custom_call.1} parent=0
    _
  %s17 = ssub.s32 1, %s15
  %s18 = scalar_select 0, %s17, %s15
  $region1: #{tpu_custom_call.1} parent=0
    #allocation2 [shape = 'u8[65536]{0}', space=vmem, size = 0x10000, scoped, tag = 'input window, operand 1']
    #allocation3 [shape = 's32[2]{0}', space=sflag, size = 0x8, scoped, tag = 'scoped memory for tpu_custom_call.1']
    #allocation4 [shape = 's32[2]{0}', space=sflag, size = 0x8, scoped, tag = 'scoped memory for tpu_custom_call.1']
    #allocation5 [shape = 'u8[65536]{0}', space=vmem, size = 0x10000, scoped, tag = 'output window, operand 0']
    #allocation6 [shape = 'u8[131072]{0}', space=vmem, size = 0x20000, scoped, tag = 'output window, operand 1']
    #allocation7 [shape = 's32[2]{0}', space=sflag, size = 0x8, scoped, tag = 'scoped memory for tpu_custom_call.1']
    %19 = vsyncpa [#allocation3], 0
    %s20 = scalar_lea.sflag [#allocation3], 1
    %21 = vsyncpa %s20, 0
    %22 = vsyncpa [#allocation4], 0
    %s23 = scalar_lea.sflag [#allocation4], 1
    %24 = vsyncpa %s23, 0
    %25 = vsyncpa [#allocation7], 0
    %s26 = scalar_lea.sflag [#allocation7], 1
    %27 = vsyncpa %s26, 0
    loop: start=0, step=1, limit=7
    $region2: #{tpu_custom_call.1} parent=1 // loop_pre_header
      _
    $region3: #{tpu_custom_call.1} parent=1 // loop_header
      %s29 = sphi 0, %s33
      %p30 = scmp.ge.s32.totalorder %s29, 7
      %s39 = sphi 0, %s41
      %s42 = sphi 0, %s39
      %s43 = sphi 0, %s42
      %s59 = sphi 0, %s43
      %s65 = sphi 0, %s67
      %s68 = sphi 0, %s65
      %s69 = sphi 0, %s68
      %s85 = sphi 0, %s69
      %s91 = sphi 0, %s93
      %s94 = sphi 0, %s91
      %s95 = sphi 0, %s94
      %s111 = sphi 0, %s95
      %s115 = sphi 0, %s115
      %s117 = sphi 0, %s115
      %s118 = sphi 0, %s117
      %s132 = sphi 0, %s118
      %s136 = sphi 0, %s136
      %s138 = sphi 0, %s136
      %s139 = sphi 0, %s138
      %s153 = sphi 0, %s139
      %s157 = sphi 0, %s157
      %s159 = sphi 0, %s157
      %s160 = sphi 0, %s159
      %s174 = sphi 0, %s160
      %s178 = sphi 0, %s178
      %s180 = sphi 0, %s178
      %s181 = sphi 0, %s180
      %s195 = sphi 0, %s181
      %s199 = sphi 0, %s199
      %s201 = sphi 0, %s199
      %s202 = sphi 0, %s201
      %s216 = sphi 0, %s202
      %s220 = sphi 0, %s220
      %s222 = sphi 0, %s220
      %s223 = sphi 0, %s222
      %s237 = sphi 0, %s223
      %s241 = sphi 0, %s241
      %s243 = sphi 0, %s241
      %s244 = sphi 0, %s243
      %s258 = sphi 0, %s244
      %s262 = sphi 0, %s262
      %s264 = sphi 0, %s262
      %s265 = sphi 0, %s264
      %s279 = sphi 0, %s265
      %s285 = sphi 0, %s287
      %s288 = sphi 0, %s285
      %s289 = sphi 0, %s288
      %s305 = sphi 0, %s289
      %s311 = sphi 0, %s313
      %s314 = sphi 0, %s311
      %s315 = sphi 0, %s314
      %s331 = sphi 0, %s315
      %s337 = sphi 0, %s339
      %s340 = sphi 0, %s337
      %s341 = sphi 0, %s340
      %s357 = sphi 0, %s341
    $region4: #{tpu_custom_call.1} parent=1 // loop_header_branch
      %32 = sbr.rel (%p30) target = $region8
    $region5: #{tpu_custom_call.1} parent=1 // loop_body
      %s34 = ssub.s32 %s29, 1
      %s35 = ssub.s32 %s29, 2
      %s36 = sadd.s32 %s29, 1
      %s37 = ssub.s32 %s29, %s36
      %p38 = scmp.eq.s32.totalorder %s37, 0
      %s40 = sadd.s32 %s39, 1
      %s41 = scalar_select %p38, %s39, %s40
      %p44 = pneg %p38
      %p45 = scmp.eq.s32.totalorder %s29, 4
      %p46 = por %p44, %p45
      %p47 = scmp.ne.s32.totalorder %s39, %s42
      %p48 = scmp.eq.s32.totalorder %s29, 0
      %p49 = por %p47, %p48
      %p50 = scmp.ne.s32.totalorder %s39, %s42
      %p51 = scmp.eq.s32.totalorder %s34, 4
      %p52 = por %p50, %p51
      %p53 = scmp.ne.s32.totalorder %s42, %s43
      %p54 = scmp.eq.s32.totalorder %s34, 0
      %p55 = por %p53, %p54
      %p56 = scmp.ne.s32.totalorder %s42, %s43
      %p57 = scmp.eq.s32.totalorder %s35, 4
      %p58 = por %p56, %p57
      %p60 = scmp.ne.s32.totalorder %s43, %s59
      %p61 = scmp.eq.s32.totalorder %s35, 0
      %p62 = por %p60, %p61
      %s63 = ssub.s32 %s29, %s36
      %p64 = scmp.eq.s32.totalorder %s63, 0
      %s66 = sadd.s32 %s65, 1
      %s67 = scalar_select %p64, %s65, %s66
      %p70 = pneg %p64
      %p71 = scmp.eq.s32.totalorder %s29, 4
      %p72 = por %p70, %p71
      %p73 = scmp.ne.s32.totalorder %s65, %s68
      %p74 = scmp.eq.s32.totalorder %s29, 0
      %p75 = por %p73, %p74
      %p76 = scmp.ne.s32.totalorder %s65, %s68
      %p77 = scmp.eq.s32.totalorder %s34, 4
      %p78 = por %p76, %p77
      %p79 = scmp.ne.s32.totalorder %s68, %s69
      %p80 = scmp.eq.s32.totalorder %s34, 0
      %p81 = por %p79, %p80
      %p82 = scmp.ne.s32.totalorder %s68, %s69
      %p83 = scmp.eq.s32.totalorder %s35, 4
      %p84 = por %p82, %p83
      %p86 = scmp.ne.s32.totalorder %s69, %s85
      %p87 = scmp.eq.s32.totalorder %s35, 0
      %p88 = por %p86, %p87
      %s89 = ssub.s32 %s29, %s36
      %p90 = scmp.eq.s32.totalorder %s89, 0
      %s92 = sadd.s32 %s91, 1
      %s93 = scalar_select %p90, %s91, %s92
      %p96 = pneg %p90
      %p97 = scmp.eq.s32.totalorder %s29, 4
      %p98 = por %p96, %p97
      %p99 = scmp.ne.s32.totalorder %s91, %s94
      %p100 = scmp.eq.s32.totalorder %s29, 0
      %p101 = por %p99, %p100
      %p102 = scmp.ne.s32.totalorder %s91, %s94
      %p103 = scmp.eq.s32.totalorder %s34, 4
      %p104 = por %p102, %p103
      %p105 = scmp.ne.s32.totalorder %s94, %s95
      %p106 = scmp.eq.s32.totalorder %s34, 0
      %p107 = por %p105, %p106
      %p108 = scmp.ne.s32.totalorder %s94, %s95
      %p109 = scmp.eq.s32.totalorder %s35, 4
      %p110 = por %p108, %p109
      %p112 = scmp.ne.s32.totalorder %s95, %s111
      %p113 = scmp.eq.s32.totalorder %s35, 0
      %p114 = por %p112, %p113
      %s116 = sadd.s32 %s115, 1
      %p119 = scmp.eq.s32.totalorder %s29, 4
      %p120 = scmp.ne.s32.totalorder %s115, %s117
      %p121 = scmp.eq.s32.totalorder %s29, 0
      %p122 = por %p120, %p121
      %p123 = scmp.ne.s32.totalorder %s115, %s117
      %p124 = scmp.eq.s32.totalorder %s34, 4
      %p125 = por %p123, %p124
      %p126 = scmp.ne.s32.totalorder %s117, %s118
      %p127 = scmp.eq.s32.totalorder %s34, 0
      %p128 = por %p126, %p127
      %p129 = scmp.ne.s32.totalorder %s117, %s118
      %p130 = scmp.eq.s32.totalorder %s35, 4
      %p131 = por %p129, %p130
      %p133 = scmp.ne.s32.totalorder %s118, %s132
      %p134 = scmp.eq.s32.totalorder %s35, 0
      %p135 = por %p133, %p134
      %s137 = sadd.s32 %s136, 1
      %p140 = scmp.eq.s32.totalorder %s29, 4
      %p141 = scmp.ne.s32.totalorder %s136, %s138
      %p142 = scmp.eq.s32.totalorder %s29, 0
      %p143 = por %p141, %p142
      %p144 = scmp.ne.s32.totalorder %s136, %s138
      %p145 = scmp.eq.s32.totalorder %s34, 4
      %p146 = por %p144, %p145
      %p147 = scmp.ne.s32.totalorder %s138, %s139
      %p148 = scmp.eq.s32.totalorder %s34, 0
      %p149 = por %p147, %p148
      %p150 = scmp.ne.s32.totalorder %s138, %s139
      %p151 = scmp.eq.s32.totalorder %s35, 4
      %p152 = por %p150, %p151
      %p154 = scmp.ne.s32.totalorder %s139, %s153
      %p155 = scmp.eq.s32.totalorder %s35, 0
      %p156 = por %p154, %p155
      %s158 = sadd.s32 %s157, 1
      %p161 = scmp.eq.s32.totalorder %s29, 4
      %p162 = scmp.ne.s32.totalorder %s157, %s159
      %p163 = scmp.eq.s32.totalorder %s29, 0
      %p164 = por %p162, %p163
      %p165 = scmp.ne.s32.totalorder %s157, %s159
      %p166 = scmp.eq.s32.totalorder %s34, 4
      %p167 = por %p165, %p166
      %p168 = scmp.ne.s32.totalorder %s159, %s160
      %p169 = scmp.eq.s32.totalorder %s34, 0
      %p170 = por %p168, %p169
      %p171 = scmp.ne.s32.totalorder %s159, %s160
      %p172 = scmp.eq.s32.totalorder %s35, 4
      %p173 = por %p171, %p172
      %p175 = scmp.ne.s32.totalorder %s160, %s174
      %p176 = scmp.eq.s32.totalorder %s35, 0
      %p177 = por %p175, %p176
      %s179 = sadd.s32 %s178, 1
      %p182 = scmp.eq.s32.totalorder %s29, 4
      %p183 = scmp.ne.s32.totalorder %s178, %s180
      %p184 = scmp.eq.s32.totalorder %s29, 0
      %p185 = por %p183, %p184
      %p186 = scmp.ne.s32.totalorder %s178, %s180
      %p187 = scmp.eq.s32.totalorder %s34, 4
      %p188 = por %p186, %p187
      %p189 = scmp.ne.s32.totalorder %s180, %s181
      %p190 = scmp.eq.s32.totalorder %s34, 0
      %p191 = por %p189, %p190
      %p192 = scmp.ne.s32.totalorder %s180, %s181
      %p193 = scmp.eq.s32.totalorder %s35, 4
      %p194 = por %p192, %p193
      %p196 = scmp.ne.s32.totalorder %s181, %s195
      %p197 = scmp.eq.s32.totalorder %s35, 0
      %p198 = por %p196, %p197
      %s200 = sadd.s32 %s199, 1
      %p203 = scmp.eq.s32.totalorder %s29, 4
      %p204 = scmp.ne.s32.totalorder %s199, %s201
      %p205 = scmp.eq.s32.totalorder %s29, 0
      %p206 = por %p204, %p205
      %p207 = scmp.ne.s32.totalorder %s199, %s201
      %p208 = scmp.eq.s32.totalorder %s34, 4
      %p209 = por %p207, %p208
      %p210 = scmp.ne.s32.totalorder %s201, %s202
      %p211 = scmp.eq.s32.totalorder %s34, 0
      %p212 = por %p210, %p211
      %p213 = scmp.ne.s32.totalorder %s201, %s202
      %p214 = scmp.eq.s32.totalorder %s35, 4
      %p215 = por %p213, %p214
      %p217 = scmp.ne.s32.totalorder %s202, %s216
      %p218 = scmp.eq.s32.totalorder %s35, 0
      %p219 = por %p217, %p218
      %s221 = sadd.s32 %s220, 1
      %p224 = scmp.eq.s32.totalorder %s29, 4
      %p225 = scmp.ne.s32.totalorder %s220, %s222
      %p226 = scmp.eq.s32.totalorder %s29, 0
      %p227 = por %p225, %p226
      %p228 = scmp.ne.s32.totalorder %s220, %s222
      %p229 = scmp.eq.s32.totalorder %s34, 4
      %p230 = por %p228, %p229
      %p231 = scmp.ne.s32.totalorder %s222, %s223
      %p232 = scmp.eq.s32.totalorder %s34, 0
      %p233 = por %p231, %p232
      %p234 = scmp.ne.s32.totalorder %s222, %s223
      %p235 = scmp.eq.s32.totalorder %s35, 4
      %p236 = por %p234, %p235
      %p238 = scmp.ne.s32.totalorder %s223, %s237
      %p239 = scmp.eq.s32.totalorder %s35, 0
      %p240 = por %p238, %p239
      %s242 = sadd.s32 %s241, 1
      %p245 = scmp.eq.s32.totalorder %s29, 4
      %p246 = scmp.ne.s32.totalorder %s241, %s243
      %p247 = scmp.eq.s32.totalorder %s29, 0
      %p248 = por %p246, %p247
      %p249 = scmp.ne.s32.totalorder %s241, %s243
      %p250 = scmp.eq.s32.totalorder %s34, 4
      %p251 = por %p249, %p250
      %p252 = scmp.ne.s32.totalorder %s243, %s244
      %p253 = scmp.eq.s32.totalorder %s34, 0
      %p254 = por %p252, %p253
      %p255 = scmp.ne.s32.totalorder %s243, %s244
      %p256 = scmp.eq.s32.totalorder %s35, 4
      %p257 = por %p255, %p256
      %p259 = scmp.ne.s32.totalorder %s244, %s258
      %p260 = scmp.eq.s32.totalorder %s35, 0
      %p261 = por %p259, %p260
      %s263 = sadd.s32 %s262, 1
      %p266 = scmp.eq.s32.totalorder %s29, 4
      %p267 = scmp.ne.s32.totalorder %s262, %s264
      %p268 = scmp.eq.s32.totalorder %s29, 0
      %p269 = por %p267, %p268
      %p270 = scmp.ne.s32.totalorder %s262, %s264
      %p271 = scmp.eq.s32.totalorder %s34, 4
      %p272 = por %p270, %p271
      %p273 = scmp.ne.s32.totalorder %s264, %s265
      %p274 = scmp.eq.s32.totalorder %s34, 0
      %p275 = por %p273, %p274
      %p276 = scmp.ne.s32.totalorder %s264, %s265
      %p277 = scmp.eq.s32.totalorder %s35, 4
      %p278 = por %p276, %p277
      %p280 = scmp.ne.s32.totalorder %s265, %s279
      %p281 = scmp.eq.s32.totalorder %s35, 0
      %p282 = por %p280, %p281
      %s283 = ssub.s32 %s29, %s36
      %p284 = scmp.eq.s32.totalorder %s283, 0
      %s286 = sadd.s32 %s285, 1
      %s287 = scalar_select %p284, %s285, %s286
      %p290 = pneg %p284
      %p291 = scmp.eq.s32.totalorder %s29, 4
      %p292 = por %p290, %p291
      %p293 = scmp.ne.s32.totalorder %s285, %s288
      %p294 = scmp.eq.s32.totalorder %s29, 0
      %p295 = por %p293, %p294
      %p296 = scmp.ne.s32.totalorder %s285, %s288
      %p297 = scmp.eq.s32.totalorder %s34, 4
      %p298 = por %p296, %p297
      %p299 = scmp.ne.s32.totalorder %s288, %s289
      %p300 = scmp.eq.s32.totalorder %s34, 0
      %p301 = por %p299, %p300
      %p302 = scmp.ne.s32.totalorder %s288, %s289
      %p303 = scmp.eq.s32.totalorder %s35, 4
      %p304 = por %p302, %p303
      %p306 = scmp.ne.s32.totalorder %s289, %s305
      %p307 = scmp.eq.s32.totalorder %s35, 0
      %p308 = por %p306, %p307
      %s309 = ssub.s32 %s29, %s36
      %p310 = scmp.eq.s32.totalorder %s309, 0
      %s312 = sadd.s32 %s311, 1
      %s313 = scalar_select %p310, %s311, %s312
      %p316 = pneg %p310
      %p317 = scmp.eq.s32.totalorder %s29, 4
      %p318 = por %p316, %p317
      %p319 = scmp.ne.s32.totalorder %s311, %s314
      %p320 = scmp.eq.s32.totalorder %s29, 0
      %p321 = por %p319, %p320
      %p322 = scmp.ne.s32.totalorder %s311, %s314
      %p323 = scmp.eq.s32.totalorder %s34, 4
      %p324 = por %p322, %p323
      %p325 = scmp.ne.s32.totalorder %s314, %s315
      %p326 = scmp.eq.s32.totalorder %s34, 0
      %p327 = por %p325, %p326
      %p328 = scmp.ne.s32.totalorder %s314, %s315
      %p329 = scmp.eq.s32.totalorder %s35, 4
      %p330 = por %p328, %p329
      %p332 = scmp.ne.s32.totalorder %s315, %s331
      %p333 = scmp.eq.s32.totalorder %s35, 0
      %p334 = por %p332, %p333
      %s335 = ssub.s32 %s29, %s36
      %p336 = scmp.eq.s32.totalorder %s335, 0
      %s338 = sadd.s32 %s337, 1
      %s339 = scalar_select %p336, %s337, %s338
      %p342 = pneg %p336
      %p343 = scmp.eq.s32.totalorder %s29, 4
      %p344 = por %p342, %p343
      %p345 = scmp.ne.s32.totalorder %s337, %s340
      %p346 = scmp.eq.s32.totalorder %s29, 0
      %p347 = por %p345, %p346
      %p348 = scmp.ne.s32.totalorder %s337, %s340
      %p349 = scmp.eq.s32.totalorder %s34, 4
      %p350 = por %p348, %p349
      %p351 = scmp.ne.s32.totalorder %s340, %s341
      %p352 = scmp.eq.s32.totalorder %s34, 0
      %p353 = por %p351, %p352
      %p354 = scmp.ne.s32.totalorder %s340, %s341
      %p355 = scmp.eq.s32.totalorder %s35, 4
      %p356 = por %p354, %p355
      %p358 = scmp.ne.s32.totalorder %s341, %s357
      %p359 = scmp.eq.s32.totalorder %s35, 0
      %p360 = por %p358, %p359
      %p361 = scmp.le.s32.totalorder 1, %s29
      %p362 = scmp.lt.s32.totalorder %s29, 6
      %p363 = pnand %p361, %p362
      %p364 = pneg %p363
      // Predicated region
      $region9: #{tpu_custom_call.1} parent=5 // pred_check
        _
      $region10: #{tpu_custom_call.1} parent=5 // pred_check_branch
        %366 = sbr.rel (%p363) target = $region12
      $region11: #{tpu_custom_call.1} parent=5 // pred_region
        %s367 = ssub.s32 %s29, 1
        // Predicated region
        $region13: #{tpu_custom_call.1} parent=11 // pred_check
          %p368 = pneg %p128
        $region14: #{tpu_custom_call.1} parent=11 // pred_check_branch
          %370 = sbr.rel (%p368) target = $region16
        $region15: #{tpu_custom_call.1} parent=11 // pred_region
          _
        $region16: #{tpu_custom_call.1} parent=11 // pred_fallthru
          _
        // Predicated region
        $region17: #{tpu_custom_call.1} parent=11 // pred_check
          %p371 = pneg %p149
        $region18: #{tpu_custom_call.1} parent=11 // pred_check_branch
          %373 = sbr.rel (%p371) target = $region20
        $region19: #{tpu_custom_call.1} parent=11 // pred_region
          _
        $region20: #{tpu_custom_call.1} parent=11 // pred_fallthru
          _
        // Predicated region
        $region21: #{tpu_custom_call.1} parent=11 // pred_check
          %p374 = pneg %p170
        $region22: #{tpu_custom_call.1} parent=11 // pred_check_branch
          %376 = sbr.rel (%p374) target = $region24
        $region23: #{tpu_custom_call.1} parent=11 // pred_region
          _
        $region24: #{tpu_custom_call.1} parent=11 // pred_fallthru
          _
        // Predicated region
        $region25: #{tpu_custom_call.1} parent=11 // pred_check
          %p377 = pneg %p191
        $region26: #{tpu_custom_call.1} parent=11 // pred_check_branch
          %379 = sbr.rel (%p377) target = $region28
        $region27: #{tpu_custom_call.1} parent=11 // pred_region
          _
        $region28: #{tpu_custom_call.1} parent=11 // pred_fallthru
          _
        // Predicated region
        $region29: #{tpu_custom_call.1} parent=11 // pred_check
          %p380 = pneg %p212
        $region30: #{tpu_custom_call.1} parent=11 // pred_check_branch
          %382 = sbr.rel (%p380) target = $region32
        $region31: #{tpu_custom_call.1} parent=11 // pred_region
          _
        $region32: #{tpu_custom_call.1} parent=11 // pred_fallthru
          _
        // Predicated region
        $region33: #{tpu_custom_call.1} parent=11 // pred_check
          %p383 = pneg %p233
        $region34: #{tpu_custom_call.1} parent=11 // pred_check_branch
          %385 = sbr.rel (%p383) target = $region36
        $region35: #{tpu_custom_call.1} parent=11 // pred_region
          _
        $region36: #{tpu_custom_call.1} parent=11 // pred_fallthru
          _
        // Predicated region
        $region37: #{tpu_custom_call.1} parent=11 // pred_check
          %p386 = pneg %p254
        $region38: #{tpu_custom_call.1} parent=11 // pred_check_branch
          %388 = sbr.rel (%p386) target = $region40
        $region39: #{tpu_custom_call.1} parent=11 // pred_region
          _
        $region40: #{tpu_custom_call.1} parent=11 // pred_fallthru
          _
        // Predicated region
        $region41: #{tpu_custom_call.1} parent=11 // pred_check
          %p389 = pneg %p275
        $region42: #{tpu_custom_call.1} parent=11 // pred_check_branch
          %391 = sbr.rel (%p389) target = $region44
        $region43: #{tpu_custom_call.1} parent=11 // pred_region
          _
        $region44: #{tpu_custom_call.1} parent=11 // pred_fallthru
          _
      $region12: #{tpu_custom_call.1} parent=5 // pred_fallthru
        _
      %p392 = scmp.lt.s32.totalorder %s29, 5
      // Predicated region
      $region45: #{tpu_custom_call.1} parent=5 // pred_check
        %p393 = pneg %p392
      $region46: #{tpu_custom_call.1} parent=5 // pred_check_branch
        %395 = sbr.rel (%p393) target = $region48
      $region47: #{tpu_custom_call.1} parent=5 // pred_region
        // Predicated region
        $region49: #{tpu_custom_call.1} parent=47 // pred_check
          %p396 = pneg %p49
        $region50: #{tpu_custom_call.1} parent=47 // pred_check_branch
          %398 = sbr.rel (%p396) target = $region52
        $region51: #{tpu_custom_call.1} parent=47 // pred_region
          %s399 = smul.u32 16, %s29
          %p400 = scmp.lt.s32.totalorder %s399, 79
          %s401 = scalar_select %p400, %s399, 79
          %s402 = smul.addr %s401, 8
          %s403 = scalar_lea.vmem %s0, %s402
          %s404 = smul.u32 16, %s29
        $region52: #{tpu_custom_call.1} parent=47 // pred_fallthru
          _
        // Predicated region
        $region53: #{tpu_custom_call.1} parent=47 // pred_check
          %p405 = pneg %p75
        $region54: #{tpu_custom_call.1} parent=47 // pred_check_branch
          %407 = sbr.rel (%p405) target = $region56
        $region55: #{tpu_custom_call.1} parent=47 // pred_region
          %s408 = sand.u32 %s65, 1
          %s409 = scalar_lea.sflag [#allocation3], %s408
          %s410 = sand.u32 %s65, 1
          %s411 = smul.addr %s410, 64
          %s412 = scalar_lea.vmem [#allocation2], %s411
          %s413 = smul.u32 16, %s29
          %s415 = ssub.s32 1024, 1024
          %416 = vsyncadd %s409, %s415
          %s417 = smul.addr %s413, 64
          %s418 = scalar_lea.hbm %s1, %s417
          %s419 = sshll.u32 %s412, 4
          %s420 = int_to_ptr.vmem [resolvable:$true] %s419
          %425 = dma.hbm_to_vmem [thread:$0]  %s418, 1024, %s420, %s409, 64, 64, 4
        $region56: #{tpu_custom_call.1} parent=47 // pred_fallthru
          _
        // Predicated region
        $region57: #{tpu_custom_call.1} parent=47 // pred_check
          %p426 = pneg %p101
        $region58: #{tpu_custom_call.1} parent=47 // pred_check_branch
          %428 = sbr.rel (%p426) target = $region60
        $region59: #{tpu_custom_call.1} parent=47 // pred_region
          %s429 = smul.u32 16, %s29
          %p430 = scmp.lt.s32.totalorder %s429, 79
          %s431 = scalar_select %p430, %s429, 79
          %s432 = smul.addr %s431, 8
          %s433 = scalar_lea.vmem %s2, %s432
          %s434 = smul.u32 16, %s29
        $region60: #{tpu_custom_call.1} parent=47 // pred_fallthru
          _
      $region48: #{tpu_custom_call.1} parent=5 // pred_fallthru
        _
      %p435 = scmp.le.s32.totalorder 1, %s29
      %p436 = scmp.lt.s32.totalorder %s29, 6
      %p437 = pnand %p435, %p436
      %p438 = pneg %p437
      // Predicated region
      $region61: #{tpu_custom_call.1} parent=5 // pred_check
        _
      $region62: #{tpu_custom_call.1} parent=5 // pred_check_branch
        %440 = sbr.rel (%p437) target = $region64
      $region63: #{tpu_custom_call.1} parent=5 // pred_region
        %s441 = ssub.s32 %s29, 1
        %s442 = sand.u32 %s68, 1
        %s443 = scalar_lea.sflag [#allocation3], %s442
        %s444 = sand.u32 %s68, 1
        %s445 = smul.addr %s444, 64
        %s446 = scalar_lea.vmem [#allocation2], %s445
        // Predicated region
        $region65: #{tpu_custom_call.1} parent=63 // pred_check
          %p447 = pneg %p81
        $region66: #{tpu_custom_call.1} parent=63 // pred_check_branch
          %449 = sbr.rel (%p447) target = $region68
        $region67: #{tpu_custom_call.1} parent=63 // pred_region
          %450 = dma.done %s443, 1024
        $region68: #{tpu_custom_call.1} parent=63 // pred_fallthru
          _
        %s451 = smul.u32 16, %s34
        %p452 = scmp.lt.s32.totalorder %s451, 79
        %s453 = scalar_select %p452, %s451, 79
        %s454 = smul.addr %s453, 8
        %s455 = scalar_lea.vmem %s0, %s454
        %p456 = pneg %p55
        %p457 = pneg %p52
        %s458 = sand.u32 %s68, 1
        %s459 = scalar_lea.sflag [#allocation3], %s458
        %s460 = sand.u32 %s68, 1
        %s461 = smul.addr %s460, 64
        %s462 = scalar_lea.vmem [#allocation2], %s461
        %p463 = pneg %p81
        %p464 = pneg %p78
        %s465 = smul.u32 16, %s34
        %p466 = scmp.lt.s32.totalorder %s465, 79
        %s467 = scalar_select %p466, %s465, 79
        %s468 = smul.addr %s467, 8
        %s469 = scalar_lea.vmem %s2, %s468
        %p470 = pneg %p107
        %p471 = pneg %p104
        %p472 = pneg %p128
        %p473 = pneg %p125
        %p474 = pneg %p149
        %p475 = pneg %p146
        %p476 = pneg %p170
        %p477 = pneg %p167
        %p478 = pneg %p191
        %p479 = pneg %p188
        %p480 = pneg %p212
        %p481 = pneg %p209
        %p482 = pneg %p233
        %p483 = pneg %p230
        %p484 = pneg %p254
        %p485 = pneg %p251
        %p486 = pneg %p275
        %p487 = pneg %p272
        %p488 = pneg %p301
        %p489 = pneg %p298
        %s490 = sand.u32 %s288, 1
        %s491 = scalar_lea.sflag [#allocation4], %s490
        %s492 = sand.u32 %s288, 1
        %s493 = smul.addr %s492, 64
        %s494 = scalar_lea.vmem [#allocation5], %s493
        %p495 = pneg %p327
        %p496 = pneg %p324
        %s497 = sand.u32 %s314, 1
        %s498 = scalar_lea.sflag [#allocation7], %s497
        %s499 = sand.u32 %s314, 1
        %s500 = smul.addr %s499, 128
        %s501 = scalar_lea.vmem [#allocation6], %s500
        %p502 = pneg %p353
        %p503 = pneg %p350
        %s504 = smul.u32 16, %s34
        %p505 = scmp.lt.s32.totalorder %s504, 79
        %s506 = scalar_select %p505, %s504, 79
        %s507 = smul.addr %s506, 4
        %s508 = scalar_lea.vmem %s13, %s507
        %s509 = smul.u32 16, %s34
        %p510 = scmp.lt.s32.totalorder %s509, 79
        %s511 = scalar_select %p510, %s509, 79
        %s512 = smul.addr %s511, 8
        %s513 = scalar_lea.vmem %s0, %s512
        %s514 = smul.u32 16, %s34
        %s515 = smul.u32 16, %s34
        %s516 = smul.u32 16, %s34
        %p517 = scmp.lt.s32.totalorder %s516, 79
        %s518 = scalar_select %p517, %s516, 79
        %s519 = smul.addr %s518, 8
        %s520 = scalar_lea.vmem %s2, %s519
        %s521 = smul.u32 16, %s34
        %s522 = smul.u32 16, %s34
        %s523 = smul.u32 16, %s34
        %s524 = smul.u32 16, %s34
        %p525 = scmp.lt.s32.totalorder %s524, 79
        %s526 = scalar_select %p525, %s524, 79
        %s527 = smul.addr %s526, 4
        %s528 = scalar_lea.vmem %s13, %s527
        %s529 = smul.u32 16, %s34
        %v531 = vld [vmem:[%s513] sm:$0xff]
        %v532 = vld [vmem:[%s513 + $0x8] sm:$0xff]
        %v533 = vld [vmem:[%s513 + $0x10] sm:$0xff]
        %v534 = vld [vmem:[%s513 + $0x18] sm:$0xff]
        %v535 = vld [vmem:[%s513 + $0x20] sm:$0xff]
        %v536 = vld [vmem:[%s513 + $0x28] sm:$0xff]
        %v537 = vld [vmem:[%s513 + $0x30] sm:$0xff]
        %v538 = vld [vmem:[%s513 + $0x38] sm:$0xff]
        %v539 = vld [vmem:[%s513 + $0x40] sm:$0xff]
        %v540 = vld [vmem:[%s513 + $0x48] sm:$0xff]
        %v541 = vld [vmem:[%s513 + $0x50] sm:$0xff]
        %v542 = vld [vmem:[%s513 + $0x58] sm:$0xff]
        %v543 = vld [vmem:[%s513 + $0x60] sm:$0xff]
        %v544 = vld [vmem:[%s513 + $0x68] sm:$0xff]
        %v545 = vld [vmem:[%s513 + $0x70] sm:$0xff]
        %v546 = vld [vmem:[%s513 + $0x78] sm:$0xff]
        %v547 = vpack.c.bf16 %v532, %v531
        %v548 = vpack.c.bf16 %v534, %v533
        %v549 = vpack.c.bf16 %v536, %v535
        %v550 = vpack.c.bf16 %v538, %v537
        %v551 = vpack.c.bf16 %v540, %v539
        %v552 = vpack.c.bf16 %v542, %v541
        %v553 = vpack.c.bf16 %v544, %v543
        %v554 = vpack.c.bf16 %v546, %v545
        %v555 = vld [vmem:[%s446] sm:$0xf]
        %v556 = vld [vmem:[%s446 + $0x4] sm:$0xf]
        %v557 = vld [vmem:[%s446 + $0x8] sm:$0xf]
        %v558 = vld [vmem:[%s446 + $0xc] sm:$0xf]
        %v559 = vld [vmem:[%s446 + $0x10] sm:$0xf]
        %v560 = vld [vmem:[%s446 + $0x14] sm:$0xf]
        %v561 = vld [vmem:[%s446 + $0x18] sm:$0xf]
        %v562 = vld [vmem:[%s446 + $0x1c] sm:$0xf]
        %v563 = vld [vmem:[%s446 + $0x20] sm:$0xf]
        %v564 = vld [vmem:[%s446 + $0x24] sm:$0xf]
        %v565 = vld [vmem:[%s446 + $0x28] sm:$0xf]
        %v566 = vld [vmem:[%s446 + $0x2c] sm:$0xf]
        %v567 = vld [vmem:[%s446 + $0x30] sm:$0xf]
        %v568 = vld [vmem:[%s446 + $0x34] sm:$0xf]
        %v569 = vld [vmem:[%s446 + $0x38] sm:$0xf]
        %v570 = vld [vmem:[%s446 + $0x3c] sm:$0xf]
        %v587 = vunpack.c.l.b16 %v555
        %v588 = vunpack.c.l.b16 %v556
        %v589 = vunpack.c.l.b16 %v557
        %v590 = vunpack.c.l.b16 %v558
        %v591 = vunpack.c.l.b16 %v559
        %v592 = vunpack.c.l.b16 %v560
        %v593 = vunpack.c.l.b16 %v561
        %v594 = vunpack.c.l.b16 %v562
        %v595 = vunpack.c.l.b16 %v563
        %v596 = vunpack.c.l.b16 %v564
        %v597 = vunpack.c.l.b16 %v565
        %v598 = vunpack.c.l.b16 %v566
        %v599 = vunpack.c.l.b16 %v567
        %v600 = vunpack.c.l.b16 %v568
        %v601 = vunpack.c.l.b16 %v569
        %v602 = vunpack.c.l.b16 %v570
        %v603 = vpack.c.b16 %v588, %v587
        %v604 = vpack.c.b16 %v590, %v589
        %v605 = vpack.c.b16 %v592, %v591
        %v606 = vpack.c.b16 %v594, %v593
        %v607 = vpack.c.b16 %v596, %v595
        %v608 = vpack.c.b16 %v598, %v597
        %v609 = vpack.c.b16 %v600, %v599
        %v610 = vpack.c.b16 %v602, %v601
        %v619 = vadd.bf16 %v547, %v603
        %v620 = vadd.bf16 %v548, %v604
        %v621 = vadd.bf16 %v549, %v605
        %v622 = vadd.bf16 %v550, %v606
        %v623 = vadd.bf16 %v551, %v607
        %v624 = vadd.bf16 %v552, %v608
        %v625 = vadd.bf16 %v553, %v609
        %v626 = vadd.bf16 %v554, %v610
        %v627 = vld [vmem:[%s3] sm:$0xf]
        %v628 = vld [vmem:[%s3 + $0x4] sm:$0xf]
        %v629 = vld [vmem:[%s3 + $0x8] sm:$0xf]
        %v630 = vld [vmem:[%s3 + $0xc] sm:$0xf]
        %v631 = vld [vmem:[%s3 + $0x10] sm:$0xf]
        %v632 = vld [vmem:[%s3 + $0x14] sm:$0xf]
        %v633 = vld [vmem:[%s3 + $0x18] sm:$0xf]
        %v634 = vld [vmem:[%s3 + $0x1c] sm:$0xf]
        %v635 = vld [vmem:[%s3 + $0x20] sm:$0xf]
        %v636 = vld [vmem:[%s3 + $0x24] sm:$0xf]
        %v637 = vld [vmem:[%s3 + $0x28] sm:$0xf]
        %v638 = vld [vmem:[%s3 + $0x2c] sm:$0xf]
        %v639 = vld [vmem:[%s3 + $0x30] sm:$0xf]
        %v640 = vld [vmem:[%s3 + $0x34] sm:$0xf]
        %v641 = vld [vmem:[%s3 + $0x38] sm:$0xf]
        %v642 = vld [vmem:[%s3 + $0x3c] sm:$0xf]
        %v643 = vld [vmem:[%s4] sm:$0x1]
        %v645 = vlaneseq
        %v646 = vshrl.u32 %v645, 7
        %v647 = vsub.s32 0, %v646
        %v648 = vrot.slane %v643, %v647
        %v666 = vunpack.c.l.b16 %v627
        %v667 = vunpack.c.l.b16 %v628
        %v668 = vunpack.c.l.b16 %v629
        %v669 = vunpack.c.l.b16 %v630
        %v670 = vunpack.c.l.b16 %v631
        %v671 = vunpack.c.l.b16 %v632
        %v672 = vunpack.c.l.b16 %v633
        %v673 = vunpack.c.l.b16 %v634
        %v674 = vunpack.c.l.b16 %v635
        %v675 = vunpack.c.l.b16 %v636
        %v676 = vunpack.c.l.b16 %v637
        %v677 = vunpack.c.l.b16 %v638
        %v678 = vunpack.c.l.b16 %v639
        %v679 = vunpack.c.l.b16 %v640
        %v680 = vunpack.c.l.b16 %v641
        %v681 = vunpack.c.l.b16 %v642
        %v682 = vpack.c.b16 %v667, %v666
        %v683 = vpack.c.b16 %v669, %v668
        %v684 = vpack.c.b16 %v671, %v670
        %v685 = vpack.c.b16 %v673, %v672
        %v686 = vpack.c.b16 %v675, %v674
        %v687 = vpack.c.b16 %v677, %v676
        %v688 = vpack.c.b16 %v679, %v678
        %v689 = vpack.c.b16 %v681, %v680
        %698 = vmatprep.subr.bf16.mxu0 0
        %699 = vmatpush1.bf16.msra.mxu0 %v689
        %700 = vmatprep.subr.bf16.mxu0 0
        %701 = vmatpush1.bf16.msra.mxu0 %v688
        %702 = vmatprep.subr.bf16.mxu0 0
        %703 = vmatpush1.bf16.msra.mxu0 %v687
        %704 = vmatprep.subr.bf16.mxu0 0
        %705 = vmatpush1.bf16.msra.mxu0 %v686
        %706 = vmatprep.subr.bf16.mxu0 0
        %707 = vmatpush1.bf16.msra.mxu0 %v685
        %708 = vmatprep.subr.bf16.mxu0 0
        %709 = vmatpush1.bf16.msra.mxu0 %v684
        %710 = vmatprep.subr.bf16.mxu0 0
        %711 = vmatpush1.bf16.msra.mxu0 %v683
        %712 = vmatprep.subr.bf16.mxu0 0
        %713 = vmatpush1.bf16.msra.mxu0 %v682
        %714 = vmatprep.subr.bf16.mxu0 0
        %715 = vmatpush2.bf16.msra.mxu0 0
        %716 = vmatprep.subr.bf16.mxu0 0
        %717 = vmatpush2.bf16.msra.mxu0 0
        %718 = vmatprep.subr.bf16.mxu0 0
        %719 = vmatpush2.bf16.msra.mxu0 0
        %720 = vmatprep.subr.bf16.mxu0 0
        %721 = vmatpush2.bf16.msra.mxu0 0
        %722 = vmatprep.subr.bf16.mxu0 0
        %723 = vmatpush2.bf16.msra.mxu0 0
        %724 = vmatprep.subr.bf16.mxu0 0
        %725 = vmatpush2.bf16.msra.mxu0 0
        %726 = vmatprep.subr.bf16.mxu0 0
        %727 = vmatpush2.bf16.msra.mxu0 0
        %728 = vmatprep.subr.bf16.mxu0 0
        %729 = vmatpush2.bf16.msra.mxu0 0
        %730 = vmatprep.mubr.bf16.mxu0 0
        %731 = vmatmul.mubr.bf16.gmra.mxu0 %v547
        %v732 = vpop.f32.mrf.mxu0
        %v733 = vadd.f32 %v648, %v732
        %v734 = vpop.f32.mrf.mxu0
        %v735 = vpop.f32.mrf.mxu0
        %v736 = vadd.f32 %v648, %v735
        %v737 = vpop.f32.mrf.mxu0
        %738 = vmatprep.mubr.bf16.mxu0 0
        %739 = vmatmul.mubr.bf16.gmra.mxu0 %v548
        %v740 = vpop.f32.mrf.mxu0
        %v741 = vadd.f32 %v648, %v740
        %v742 = vpop.f32.mrf.mxu0
        %v743 = vpop.f32.mrf.mxu0
        %v744 = vadd.f32 %v648, %v743
        %v745 = vpop.f32.mrf.mxu0
        %746 = vmatprep.mubr.bf16.mxu0 0
        %747 = vmatmul.mubr.bf16.gmra.mxu0 %v549
        %v748 = vpop.f32.mrf.mxu0
        %v749 = vadd.f32 %v648, %v748
        %v750 = vpop.f32.mrf.mxu0
        %v751 = vpop.f32.mrf.mxu0
        %v752 = vadd.f32 %v648, %v751
        %v753 = vpop.f32.mrf.mxu0
        %754 = vmatprep.mubr.bf16.mxu0 0
        %755 = vmatmul.mubr.bf16.gmra.mxu0 %v550
        %v756 = vpop.f32.mrf.mxu0
        %v757 = vadd.f32 %v648, %v756
        %v758 = vpop.f32.mrf.mxu0
        %v759 = vpop.f32.mrf.mxu0
        %v760 = vadd.f32 %v648, %v759
        %v761 = vpop.f32.mrf.mxu0
        %762 = vmatprep.mubr.bf16.mxu0 0
        %763 = vmatmul.mubr.bf16.gmra.mxu0 %v551
        %v764 = vpop.f32.mrf.mxu0
        %v765 = vadd.f32 %v648, %v764
        %v766 = vpop.f32.mrf.mxu0
        %v767 = vpop.f32.mrf.mxu0
        %v768 = vadd.f32 %v648, %v767
        %v769 = vpop.f32.mrf.mxu0
        %770 = vmatprep.mubr.bf16.mxu0 0
        %771 = vmatmul.mubr.bf16.gmra.mxu0 %v552
        %v772 = vpop.f32.mrf.mxu0
        %v773 = vadd.f32 %v648, %v772
        %v774 = vpop.f32.mrf.mxu0
        %v775 = vpop.f32.mrf.mxu0
        %v776 = vadd.f32 %v648, %v775
        %v777 = vpop.f32.mrf.mxu0
        %778 = vmatprep.mubr.bf16.mxu0 0
        %779 = vmatmul.mubr.bf16.gmra.mxu0 %v553
        %v780 = vpop.f32.mrf.mxu0
        %v781 = vadd.f32 %v648, %v780
        %v782 = vpop.f32.mrf.mxu0
        %v783 = vpop.f32.mrf.mxu0
        %v784 = vadd.f32 %v648, %v783
        %v785 = vpop.f32.mrf.mxu0
        %786 = vmatprep.mubr.bf16.mxu0 0
        %787 = vmatmul.mubr.bf16.gmra.mxu0 %v554
        %v788 = vpop.f32.mrf.mxu0
        %v789 = vadd.f32 %v648, %v788
        %v790 = vpop.f32.mrf.mxu0
        %v791 = vpop.f32.mrf.mxu0
        %v792 = vadd.f32 %v648, %v791
        %v793 = vpop.f32.mrf.mxu0
        %794 = vdwg.mxu0
        %v795 = vld [vmem:[%s520] sm:$0xff]
        %v796 = vld [vmem:[%s520 + $0x8] sm:$0xff]
        %v797 = vld [vmem:[%s520 + $0x10] sm:$0xff]
        %v798 = vld [vmem:[%s520 + $0x18] sm:$0xff]
        %v799 = vld [vmem:[%s520 + $0x20] sm:$0xff]
        %v800 = vld [vmem:[%s520 + $0x28] sm:$0xff]
        %v801 = vld [vmem:[%s520 + $0x30] sm:$0xff]
        %v802 = vld [vmem:[%s520 + $0x38] sm:$0xff]
        %v803 = vld [vmem:[%s520 + $0x40] sm:$0xff]
        %v804 = vld [vmem:[%s520 + $0x48] sm:$0xff]
        %v805 = vld [vmem:[%s520 + $0x50] sm:$0xff]
        %v806 = vld [vmem:[%s520 + $0x58] sm:$0xff]
        %v807 = vld [vmem:[%s520 + $0x60] sm:$0xff]
        %v808 = vld [vmem:[%s520 + $0x68] sm:$0xff]
        %v809 = vld [vmem:[%s520 + $0x70] sm:$0xff]
        %v810 = vld [vmem:[%s520 + $0x78] sm:$0xff]
        %vm811 = vcmp.gt.f32.partialorder %v795, 0.5
        %vm812 = vcmp.gt.f32.partialorder %v796, 0.5
        %vm813 = vcmp.gt.f32.partialorder %v797, 0.5
        %vm814 = vcmp.gt.f32.partialorder %v798, 0.5
        %vm815 = vcmp.gt.f32.partialorder %v799, 0.5
        %vm816 = vcmp.gt.f32.partialorder %v800, 0.5
        %vm817 = vcmp.gt.f32.partialorder %v801, 0.5
        %vm818 = vcmp.gt.f32.partialorder %v802, 0.5
        %vm819 = vcmp.gt.f32.partialorder %v803, 0.5
        %vm820 = vcmp.gt.f32.partialorder %v804, 0.5
        %vm821 = vcmp.gt.f32.partialorder %v805, 0.5
        %vm822 = vcmp.gt.f32.partialorder %v806, 0.5
        %vm823 = vcmp.gt.f32.partialorder %v807, 0.5
        %vm824 = vcmp.gt.f32.partialorder %v808, 0.5
        %vm825 = vcmp.gt.f32.partialorder %v809, 0.5
        %vm826 = vcmp.gt.f32.partialorder %v810, 0.5
        %v827 = vsel %vm811, 1, 0
        %v828 = vsel %vm812, 1, 0
        %v829 = vsel %vm813, 1, 0
        %v830 = vsel %vm814, 1, 0
        %v831 = vsel %vm815, 1, 0
        %v832 = vsel %vm816, 1, 0
        %v833 = vsel %vm817, 1, 0
        %v834 = vsel %vm818, 1, 0
        %v835 = vsel %vm819, 1, 0
        %v836 = vsel %vm820, 1, 0
        %v837 = vsel %vm821, 1, 0
        %v838 = vsel %vm822, 1, 0
        %v839 = vsel %vm823, 1, 0
        %v840 = vsel %vm824, 1, 0
        %v841 = vsel %vm825, 1, 0
        %v842 = vsel %vm826, 1, 0
        %843 = vset.pattern.permute.xlu0 0
        %844 = vperm.xlu0 %843, %v827
        %v845 = vpop.permute.xlu0 %844
        %846 = vset.pattern.permute.xlu0 0
        %847 = vperm.xlu0 %846, %v828
        %v848 = vpop.permute.xlu0 %847
        %849 = vset.pattern.permute.xlu0 0
        %850 = vperm.xlu0 %849, %v829
        %v851 = vpop.permute.xlu0 %850
        %852 = vset.pattern.permute.xlu0 0
        %853 = vperm.xlu0 %852, %v830
        %v854 = vpop.permute.xlu0 %853
        %855 = vset.pattern.permute.xlu0 0
        %856 = vperm.xlu0 %855, %v831
        %v857 = vpop.permute.xlu0 %856
        %858 = vset.pattern.permute.xlu0 0
        %859 = vperm.xlu0 %858, %v832
        %v860 = vpop.permute.xlu0 %859
        %861 = vset.pattern.permute.xlu0 0
        %862 = vperm.xlu0 %861, %v833
        %v863 = vpop.permute.xlu0 %862
        %864 = vset.pattern.permute.xlu0 0
        %865 = vperm.xlu0 %864, %v834
        %v866 = vpop.permute.xlu0 %865
        %867 = vset.pattern.permute.xlu0 0
        %868 = vperm.xlu0 %867, %v835
        %v869 = vpop.permute.xlu0 %868
        %870 = vset.pattern.permute.xlu0 0
        %871 = vperm.xlu0 %870, %v836
        %v872 = vpop.permute.xlu0 %871
        %873 = vset.pattern.permute.xlu0 0
        %874 = vperm.xlu0 %873, %v837
        %v875 = vpop.permute.xlu0 %874
        %876 = vset.pattern.permute.xlu0 0
        %877 = vperm.xlu0 %876, %v838
        %v878 = vpop.permute.xlu0 %877
        %879 = vset.pattern.permute.xlu0 0
        %880 = vperm.xlu0 %879, %v839
        %v881 = vpop.permute.xlu0 %880
        %882 = vset.pattern.permute.xlu0 0
        %883 = vperm.xlu0 %882, %v840
        %v884 = vpop.permute.xlu0 %883
        %885 = vset.pattern.permute.xlu0 0
        %886 = vperm.xlu0 %885, %v841
        %v887 = vpop.permute.xlu0 %886
        %888 = vset.pattern.permute.xlu0 0
        %889 = vperm.xlu0 %888, %v842
        %v890 = vpop.permute.xlu0 %889
        %vm891 = vcmp.eq.s32.totalorder %v845, 1
        %vm892 = vcmp.eq.s32.totalorder %v848, 1
        %vm893 = vcmp.eq.s32.totalorder %v851, 1
        %vm894 = vcmp.eq.s32.totalorder %v854, 1
        %vm895 = vcmp.eq.s32.totalorder %v857, 1
        %vm896 = vcmp.eq.s32.totalorder %v860, 1
        %vm897 = vcmp.eq.s32.totalorder %v863, 1
        %vm898 = vcmp.eq.s32.totalorder %v866, 1
        %vm899 = vcmp.eq.s32.totalorder %v869, 1
        %vm900 = vcmp.eq.s32.totalorder %v872, 1
        %vm901 = vcmp.eq.s32.totalorder %v875, 1
        %vm902 = vcmp.eq.s32.totalorder %v878, 1
        %vm903 = vcmp.eq.s32.totalorder %v881, 1
        %vm904 = vcmp.eq.s32.totalorder %v884, 1
        %vm905 = vcmp.eq.s32.totalorder %v887, 1
        %vm906 = vcmp.eq.s32.totalorder %v890, 1
        %v907 = vsel %vm891, 0.0, %v733
        %v908 = vsel %vm892, 0.0, %v736
        %v909 = vsel %vm893, 0.0, %v741
        %v910 = vsel %vm894, 0.0, %v744
        %v911 = vsel %vm895, 0.0, %v749
        %v912 = vsel %vm896, 0.0, %v752
        %v913 = vsel %vm897, 0.0, %v757
        %v914 = vsel %vm898, 0.0, %v760
        %v915 = vsel %vm899, 0.0, %v765
        %v916 = vsel %vm900, 0.0, %v768
        %v917 = vsel %vm901, 0.0, %v773
        %v918 = vsel %vm902, 0.0, %v776
        %v919 = vsel %vm903, 0.0, %v781
        %v920 = vsel %vm904, 0.0, %v784
        %v921 = vsel %vm905, 0.0, %v789
        %v922 = vsel %vm906, 0.0, %v792
        %v923 = vpack.c.bf16 %v908, %v907
        %v924 = vpack.c.bf16 %v910, %v909
        %v925 = vpack.c.bf16 %v912, %v911
        %v926 = vpack.c.bf16 %v914, %v913
        %v927 = vpack.c.bf16 %v916, %v915
        %v928 = vpack.c.bf16 %v918, %v917
        %v929 = vpack.c.bf16 %v920, %v919
        %v930 = vpack.c.bf16 %v922, %v921
        %v939 = vunpack.c.l.b16 %v923
        %v940 = vunpack.c.h.b16 %v923
        %v941 = vunpack.c.l.b16 %v924
        %v942 = vunpack.c.h.b16 %v924
        %v943 = vunpack.c.l.b16 %v925
        %v944 = vunpack.c.h.b16 %v925
        %v945 = vunpack.c.l.b16 %v926
        %v946 = vunpack.c.h.b16 %v926
        %v947 = vunpack.c.l.b16 %v927
        %v948 = vunpack.c.h.b16 %v927
        %v949 = vunpack.c.l.b16 %v928
        %v950 = vunpack.c.h.b16 %v928
        %v951 = vunpack.c.l.b16 %v929
        %v952 = vunpack.c.h.b16 %v929
        %v953 = vunpack.c.l.b16 %v930
        %v954 = vunpack.c.h.b16 %v930
        %v955 = vpack.c.b16 %v939, %v939
        %v956 = vpack.c.b16 %v940, %v940
        %v957 = vpack.c.b16 %v941, %v941
        %v958 = vpack.c.b16 %v942, %v942
        %v959 = vpack.c.b16 %v943, %v943
        %v960 = vpack.c.b16 %v944, %v944
        %v961 = vpack.c.b16 %v945, %v945
        %v962 = vpack.c.b16 %v946, %v946
        %v963 = vpack.c.b16 %v947, %v947
        %v964 = vpack.c.b16 %v948, %v948
        %v965 = vpack.c.b16 %v949, %v949
        %v966 = vpack.c.b16 %v950, %v950
        %v967 = vpack.c.b16 %v951, %v951
        %v968 = vpack.c.b16 %v952, %v952
        %v969 = vpack.c.b16 %v953, %v953
        %v970 = vpack.c.b16 %v954, %v954
        %987 = vst [vmem:[%s494] sm:$0xf] %v955
        %988 = vst [vmem:[%s494 + $0x4] sm:$0xf] %v956
        %989 = vst [vmem:[%s494 + $0x8] sm:$0xf] %v957
        %990 = vst [vmem:[%s494 + $0xc] sm:$0xf] %v958
        %991 = vst [vmem:[%s494 + $0x10] sm:$0xf] %v959
        %992 = vst [vmem:[%s494 + $0x14] sm:$0xf] %v960
        %993 = vst [vmem:[%s494 + $0x18] sm:$0xf] %v961
        %994 = vst [vmem:[%s494 + $0x1c] sm:$0xf] %v962
        %995 = vst [vmem:[%s494 + $0x20] sm:$0xf] %v963
        %996 = vst [vmem:[%s494 + $0x24] sm:$0xf] %v964
        %997 = vst [vmem:[%s494 + $0x28] sm:$0xf] %v965
        %998 = vst [vmem:[%s494 + $0x2c] sm:$0xf] %v966
        %999 = vst [vmem:[%s494 + $0x30] sm:$0xf] %v967
        %1000 = vst [vmem:[%s494 + $0x34] sm:$0xf] %v968
        %1001 = vst [vmem:[%s494 + $0x38] sm:$0xf] %v969
        %1002 = vst [vmem:[%s494 + $0x3c] sm:$0xf] %v970
        %v1003 = vld [vmem:[%s5] sm:$0xf]
        %v1004 = vld [vmem:[%s5 + $0x4] sm:$0xf]
        %v1005 = vld [vmem:[%s5 + $0x8] sm:$0xf]
        %v1006 = vld [vmem:[%s5 + $0xc] sm:$0xf]
        %v1007 = vld [vmem:[%s5 + $0x10] sm:$0xf]
        %v1008 = vld [vmem:[%s5 + $0x14] sm:$0xf]
        %v1009 = vld [vmem:[%s5 + $0x18] sm:$0xf]
        %v1010 = vld [vmem:[%s5 + $0x1c] sm:$0xf]
        %v1011 = vld [vmem:[%s5 + $0x20] sm:$0xf]
        %v1012 = vld [vmem:[%s5 + $0x24] sm:$0xf]
        %v1013 = vld [vmem:[%s5 + $0x28] sm:$0xf]
        %v1014 = vld [vmem:[%s5 + $0x2c] sm:$0xf]
        %v1015 = vld [vmem:[%s5 + $0x30] sm:$0xf]
        %v1016 = vld [vmem:[%s5 + $0x34] sm:$0xf]
        %v1017 = vld [vmem:[%s5 + $0x38] sm:$0xf]
        %v1018 = vld [vmem:[%s5 + $0x3c] sm:$0xf]
        %v1019 = vld [vmem:[%s6] sm:$0x1]
        %v1021 = vlaneseq
        %v1022 = vshrl.u32 %v1021, 7
        %v1023 = vsub.s32 0, %v1022
        %v1024 = vrot.slane %v1019, %v1023
        %v1042 = vunpack.c.l.b16 %v1003
        %v1043 = vunpack.c.l.b16 %v1004
        %v1044 = vunpack.c.l.b16 %v1005
        %v1045 = vunpack.c.l.b16 %v1006
        %v1046 = vunpack.c.l.b16 %v1007
        %v1047 = vunpack.c.l.b16 %v1008
        %v1048 = vunpack.c.l.b16 %v1009
        %v1049 = vunpack.c.l.b16 %v1010
        %v1050 = vunpack.c.l.b16 %v1011
        %v1051 = vunpack.c.l.b16 %v1012
        %v1052 = vunpack.c.l.b16 %v1013
        %v1053 = vunpack.c.l.b16 %v1014
        %v1054 = vunpack.c.l.b16 %v1015
        %v1055 = vunpack.c.l.b16 %v1016
        %v1056 = vunpack.c.l.b16 %v1017
        %v1057 = vunpack.c.l.b16 %v1018
        %v1058 = vpack.c.b16 %v1043, %v1042
        %v1059 = vpack.c.b16 %v1045, %v1044
        %v1060 = vpack.c.b16 %v1047, %v1046
        %v1061 = vpack.c.b16 %v1049, %v1048
        %v1062 = vpack.c.b16 %v1051, %v1050
        %v1063 = vpack.c.b16 %v1053, %v1052
        %v1064 = vpack.c.b16 %v1055, %v1054
        %v1065 = vpack.c.b16 %v1057, %v1056
        %1074 = vmatprep.subr.bf16.mxu0 0
        %1075 = vmatpush1.bf16.msra.mxu0 %v1065
        %1076 = vmatprep.subr.bf16.mxu0 0
        %1077 = vmatpush1.bf16.msra.mxu0 %v1064
        %1078 = vmatprep.subr.bf16.mxu0 0
        %1079 = vmatpush1.bf16.msra.mxu0 %v1063
        %1080 = vmatprep.subr.bf16.mxu0 0
        %1081 = vmatpush1.bf16.msra.mxu0 %v1062
        %1082 = vmatprep.subr.bf16.mxu0 0
        %1083 = vmatpush1.bf16.msra.mxu0 %v1061
        %1084 = vmatprep.subr.bf16.mxu0 0
        %1085 = vmatpush1.bf16.msra.mxu0 %v1060
        %1086 = vmatprep.subr.bf16.mxu0 0
        %1087 = vmatpush1.bf16.msra.mxu0 %v1059
        %1088 = vmatprep.subr.bf16.mxu0 0
        %1089 = vmatpush1.bf16.msra.mxu0 %v1058
        %1090 = vmatprep.subr.bf16.mxu0 0
        %1091 = vmatpush2.bf16.msra.mxu0 0
        %1092 = vmatprep.subr.bf16.mxu0 0
        %1093 = vmatpush2.bf16.msra.mxu0 0
        %1094 = vmatprep.subr.bf16.mxu0 0
        %1095 = vmatpush2.bf16.msra.mxu0 0
        %1096 = vmatprep.subr.bf16.mxu0 0
        %1097 = vmatpush2.bf16.msra.mxu0 0
        %1098 = vmatprep.subr.bf16.mxu0 0
        %1099 = vmatpush2.bf16.msra.mxu0 0
        %1100 = vmatprep.subr.bf16.mxu0 0
        %1101 = vmatpush2.bf16.msra.mxu0 0
        %1102 = vmatprep.subr.bf16.mxu0 0
        %1103 = vmatpush2.bf16.msra.mxu0 0
        %1104 = vmatprep.subr.bf16.mxu0 0
        %1105 = vmatpush2.bf16.msra.mxu0 0
        %1106 = vmatprep.mubr.bf16.mxu0 0
        %1107 = vmatmul.mubr.bf16.gmra.mxu0 %v619
        %v1108 = vpop.f32.mrf.mxu0
        %v1109 = vadd.f32 %v1024, %v1108
        %v1110 = vpop.f32.mrf.mxu0
        %v1111 = vpop.f32.mrf.mxu0
        %v1112 = vadd.f32 %v1024, %v1111
        %v1113 = vpop.f32.mrf.mxu0
        %1114 = vmatprep.mubr.bf16.mxu0 0
        %1115 = vmatmul.mubr.bf16.gmra.mxu0 %v620
        %v1116 = vpop.f32.mrf.mxu0
        %v1117 = vadd.f32 %v1024, %v1116
        %v1118 = vpop.f32.mrf.mxu0
        %v1119 = vpop.f32.mrf.mxu0
        %v1120 = vadd.f32 %v1024, %v1119
        %v1121 = vpop.f32.mrf.mxu0
        %1122 = vmatprep.mubr.bf16.mxu0 0
        %1123 = vmatmul.mubr.bf16.gmra.mxu0 %v621
        %v1124 = vpop.f32.mrf.mxu0
        %v1125 = vadd.f32 %v1024, %v1124
        %v1126 = vpop.f32.mrf.mxu0
        %v1127 = vpop.f32.mrf.mxu0
        %v1128 = vadd.f32 %v1024, %v1127
        %v1129 = vpop.f32.mrf.mxu0
        %1130 = vmatprep.mubr.bf16.mxu0 0
        %1131 = vmatmul.mubr.bf16.gmra.mxu0 %v622
        %v1132 = vpop.f32.mrf.mxu0
        %v1133 = vadd.f32 %v1024, %v1132
        %v1134 = vpop.f32.mrf.mxu0
        %v1135 = vpop.f32.mrf.mxu0
        %v1136 = vadd.f32 %v1024, %v1135
        %v1137 = vpop.f32.mrf.mxu0
        %1138 = vmatprep.mubr.bf16.mxu0 0
        %1139 = vmatmul.mubr.bf16.gmra.mxu0 %v623
        %v1140 = vpop.f32.mrf.mxu0
        %v1141 = vadd.f32 %v1024, %v1140
        %v1142 = vpop.f32.mrf.mxu0
        %v1143 = vpop.f32.mrf.mxu0
        %v1144 = vadd.f32 %v1024, %v1143
        %v1145 = vpop.f32.mrf.mxu0
        %1146 = vmatprep.mubr.bf16.mxu0 0
        %1147 = vmatmul.mubr.bf16.gmra.mxu0 %v624
        %v1148 = vpop.f32.mrf.mxu0
        %v1149 = vadd.f32 %v1024, %v1148
        %v1150 = vpop.f32.mrf.mxu0
        %v1151 = vpop.f32.mrf.mxu0
        %v1152 = vadd.f32 %v1024, %v1151
        %v1153 = vpop.f32.mrf.mxu0
        %1154 = vmatprep.mubr.bf16.mxu0 0
        %1155 = vmatmul.mubr.bf16.gmra.mxu0 %v625
        %v1156 = vpop.f32.mrf.mxu0
        %v1157 = vadd.f32 %v1024, %v1156
        %v1158 = vpop.f32.mrf.mxu0
        %v1159 = vpop.f32.mrf.mxu0
        %v1160 = vadd.f32 %v1024, %v1159
        %v1161 = vpop.f32.mrf.mxu0
        %1162 = vmatprep.mubr.bf16.mxu0 0
        %1163 = vmatmul.mubr.bf16.gmra.mxu0 %v626
        %v1164 = vpop.f32.mrf.mxu0
        %v1165 = vadd.f32 %v1024, %v1164
        %v1166 = vpop.f32.mrf.mxu0
        %v1167 = vpop.f32.mrf.mxu0
        %v1168 = vadd.f32 %v1024, %v1167
        %v1169 = vpop.f32.mrf.mxu0
        %1170 = vdwg.mxu0
        %1171 = vst [vmem:[%s501] sm:$0xff] %v1109
        %1172 = vst [vmem:[%s501 + $0x8] sm:$0xff] %v1112
        %1173 = vst [vmem:[%s501 + $0x10] sm:$0xff] %v1117
        %1174 = vst [vmem:[%s501 + $0x18] sm:$0xff] %v1120
        %1175 = vst [vmem:[%s501 + $0x20] sm:$0xff] %v1125
        %1176 = vst [vmem:[%s501 + $0x28] sm:$0xff] %v1128
        %1177 = vst [vmem:[%s501 + $0x30] sm:$0xff] %v1133
        %1178 = vst [vmem:[%s501 + $0x38] sm:$0xff] %v1136
        %1179 = vst [vmem:[%s501 + $0x40] sm:$0xff] %v1141
        %1180 = vst [vmem:[%s501 + $0x48] sm:$0xff] %v1144
        %1181 = vst [vmem:[%s501 + $0x50] sm:$0xff] %v1149
        %1182 = vst [vmem:[%s501 + $0x58] sm:$0xff] %v1152
        %1183 = vst [vmem:[%s501 + $0x60] sm:$0xff] %v1157
        %1184 = vst [vmem:[%s501 + $0x68] sm:$0xff] %v1160
        %1185 = vst [vmem:[%s501 + $0x70] sm:$0xff] %v1165
        %1186 = vst [vmem:[%s501 + $0x78] sm:$0xff] %v1168
        %v1187 = vld [vmem:[%s7] sm:$0xf]
        %v1188 = vld [vmem:[%s7 + $0x4] sm:$0xf]
        %v1189 = vld [vmem:[%s7 + $0x8] sm:$0xf]
        %v1190 = vld [vmem:[%s7 + $0xc] sm:$0xf]
        %v1191 = vld [vmem:[%s7 + $0x10] sm:$0xf]
        %v1192 = vld [vmem:[%s7 + $0x14] sm:$0xf]
        %v1193 = vld [vmem:[%s7 + $0x18] sm:$0xf]
        %v1194 = vld [vmem:[%s7 + $0x1c] sm:$0xf]
        %v1195 = vld [vmem:[%s7 + $0x20] sm:$0xf]
        %v1196 = vld [vmem:[%s7 + $0x24] sm:$0xf]
        %v1197 = vld [vmem:[%s7 + $0x28] sm:$0xf]
        %v1198 = vld [vmem:[%s7 + $0x2c] sm:$0xf]
        %v1199 = vld [vmem:[%s7 + $0x30] sm:$0xf]
        %v1200 = vld [vmem:[%s7 + $0x34] sm:$0xf]
        %v1201 = vld [vmem:[%s7 + $0x38] sm:$0xf]
        %v1202 = vld [vmem:[%s7 + $0x3c] sm:$0xf]
        %v1203 = vld [vmem:[%s8] sm:$0x1]
        %v1205 = vlaneseq
        %v1206 = vshrl.u32 %v1205, 7
        %v1207 = vsub.s32 0, %v1206
        %v1208 = vrot.slane %v1203, %v1207
        %v1226 = vunpack.c.l.b16 %v1187
        %v1227 = vunpack.c.l.b16 %v1188
        %v1228 = vunpack.c.l.b16 %v1189
        %v1229 = vunpack.c.l.b16 %v1190
        %v1230 = vunpack.c.l.b16 %v1191
        %v1231 = vunpack.c.l.b16 %v1192
        %v1232 = vunpack.c.l.b16 %v1193
        %v1233 = vunpack.c.l.b16 %v1194
        %v1234 = vunpack.c.l.b16 %v1195
        %v1235 = vunpack.c.l.b16 %v1196
        %v1236 = vunpack.c.l.b16 %v1197
        %v1237 = vunpack.c.l.b16 %v1198
        %v1238 = vunpack.c.l.b16 %v1199
        %v1239 = vunpack.c.l.b16 %v1200
        %v1240 = vunpack.c.l.b16 %v1201
        %v1241 = vunpack.c.l.b16 %v1202
        %v1242 = vpack.c.b16 %v1227, %v1226
        %v1243 = vpack.c.b16 %v1229, %v1228
        %v1244 = vpack.c.b16 %v1231, %v1230
        %v1245 = vpack.c.b16 %v1233, %v1232
        %v1246 = vpack.c.b16 %v1235, %v1234
        %v1247 = vpack.c.b16 %v1237, %v1236
        %v1248 = vpack.c.b16 %v1239, %v1238
        %v1249 = vpack.c.b16 %v1241, %v1240
        %1258 = vmatprep.subr.bf16.mxu0 0
        %1259 = vmatpush1.bf16.msra.mxu0 %v1249
        %1260 = vmatprep.subr.bf16.mxu0 0
        %1261 = vmatpush1.bf16.msra.mxu0 %v1248
        %1262 = vmatprep.subr.bf16.mxu0 0
        %1263 = vmatpush1.bf16.msra.mxu0 %v1247
        %1264 = vmatprep.subr.bf16.mxu0 0
        %1265 = vmatpush1.bf16.msra.mxu0 %v1246
        %1266 = vmatprep.subr.bf16.mxu0 0
        %1267 = vmatpush1.bf16.msra.mxu0 %v1245
        %1268 = vmatprep.subr.bf16.mxu0 0
        %1269 = vmatpush1.bf16.msra.mxu0 %v1244
        %1270 = vmatprep.subr.bf16.mxu0 0
        %1271 = vmatpush1.bf16.msra.mxu0 %v1243
        %1272 = vmatprep.subr.bf16.mxu0 0
        %1273 = vmatpush1.bf16.msra.mxu0 %v1242
        %1274 = vmatprep.subr.bf16.mxu0 0
        %1275 = vmatpush2.bf16.msra.mxu0 0
        %1276 = vmatprep.subr.bf16.mxu0 0
        %1277 = vmatpush2.bf16.msra.mxu0 0
        %1278 = vmatprep.subr.bf16.mxu0 0
        %1279 = vmatpush2.bf16.msra.mxu0 0
        %1280 = vmatprep.subr.bf16.mxu0 0
        %1281 = vmatpush2.bf16.msra.mxu0 0
        %1282 = vmatprep.subr.bf16.mxu0 0
        %1283 = vmatpush2.bf16.msra.mxu0 0
        %1284 = vmatprep.subr.bf16.mxu0 0
        %1285 = vmatpush2.bf16.msra.mxu0 0
        %1286 = vmatprep.subr.bf16.mxu0 0
        %1287 = vmatpush2.bf16.msra.mxu0 0
        %1288 = vmatprep.subr.bf16.mxu0 0
        %1289 = vmatpush2.bf16.msra.mxu0 0
        %1290 = vmatprep.mubr.bf16.mxu0 0
        %1291 = vmatmul.mubr.bf16.gmra.mxu0 %v619
        %v1292 = vpop.f32.mrf.mxu0
        %v1293 = vadd.f32 %v1208, %v1292
        %v1294 = vpop.f32.mrf.mxu0
        %v1295 = vpop.f32.mrf.mxu0
        %v1296 = vadd.f32 %v1208, %v1295
        %v1297 = vpop.f32.mrf.mxu0
        %1298 = vmatprep.mubr.bf16.mxu0 0
        %1299 = vmatmul.mubr.bf16.gmra.mxu0 %v620
        %v1300 = vpop.f32.mrf.mxu0
        %v1301 = vadd.f32 %v1208, %v1300
        %v1302 = vpop.f32.mrf.mxu0
        %v1303 = vpop.f32.mrf.mxu0
        %v1304 = vadd.f32 %v1208, %v1303
        %v1305 = vpop.f32.mrf.mxu0
        %1306 = vmatprep.mubr.bf16.mxu0 0
        %1307 = vmatmul.mubr.bf16.gmra.mxu0 %v621
        %v1308 = vpop.f32.mrf.mxu0
        %v1309 = vadd.f32 %v1208, %v1308
        %v1310 = vpop.f32.mrf.mxu0
        %v1311 = vpop.f32.mrf.mxu0
        %v1312 = vadd.f32 %v1208, %v1311
        %v1313 = vpop.f32.mrf.mxu0
        %1314 = vmatprep.mubr.bf16.mxu0 0
        %1315 = vmatmul.mubr.bf16.gmra.mxu0 %v622
        %v1316 = vpop.f32.mrf.mxu0
        %v1317 = vadd.f32 %v1208, %v1316
        %v1318 = vpop.f32.mrf.mxu0
        %v1319 = vpop.f32.mrf.mxu0
        %v1320 = vadd.f32 %v1208, %v1319
        %v1321 = vpop.f32.mrf.mxu0
        %1322 = vmatprep.mubr.bf16.mxu0 0
        %1323 = vmatmul.mubr.bf16.gmra.mxu0 %v623
        %v1324 = vpop.f32.mrf.mxu0
        %v1325 = vadd.f32 %v1208, %v1324
        %v1326 = vpop.f32.mrf.mxu0
        %v1327 = vpop.f32.mrf.mxu0
        %v1328 = vadd.f32 %v1208, %v1327
        %v1329 = vpop.f32.mrf.mxu0
        %1330 = vmatprep.mubr.bf16.mxu0 0
        %1331 = vmatmul.mubr.bf16.gmra.mxu0 %v624
        %v1332 = vpop.f32.mrf.mxu0
        %v1333 = vadd.f32 %v1208, %v1332
        %v1334 = vpop.f32.mrf.mxu0
        %v1335 = vpop.f32.mrf.mxu0
        %v1336 = vadd.f32 %v1208, %v1335
        %v1337 = vpop.f32.mrf.mxu0
        %1338 = vmatprep.mubr.bf16.mxu0 0
        %1339 = vmatmul.mubr.bf16.gmra.mxu0 %v625
        %v1340 = vpop.f32.mrf.mxu0
        %v1341 = vadd.f32 %v1208, %v1340
        %v1342 = vpop.f32.mrf.mxu0
        %v1343 = vpop.f32.mrf.mxu0
        %v1344 = vadd.f32 %v1208, %v1343
        %v1345 = vpop.f32.mrf.mxu0
        %1346 = vmatprep.mubr.bf16.mxu0 0
        %1347 = vmatmul.mubr.bf16.gmra.mxu0 %v626
        %v1348 = vpop.f32.mrf.mxu0
        %v1349 = vadd.f32 %v1208, %v1348
        %v1350 = vpop.f32.mrf.mxu0
        %v1351 = vpop.f32.mrf.mxu0
        %v1352 = vadd.f32 %v1208, %v1351
        %v1353 = vpop.f32.mrf.mxu0
        %1354 = vdwg.mxu0
        %vm1355 = vcmask 523264
        %v1356 = vsel %vm1355, %v1293, -inf
        %1357 = vmax.xlane.f32.xlu0 %v1356
        %v1358 = vpop.xlane.xlu0 %1357
        %v1359 = vsel %vm1355, %v1296, -inf
        %1360 = vmax.xlane.f32.xlu0 %v1359
        %v1361 = vpop.xlane.xlu0 %1360
        %v1362 = vsel %vm1355, %v1301, -inf
        %1363 = vmax.xlane.f32.xlu0 %v1362
        %v1364 = vpop.xlane.xlu0 %1363
        %v1365 = vsel %vm1355, %v1304, -inf
        %1366 = vmax.xlane.f32.xlu0 %v1365
        %v1367 = vpop.xlane.xlu0 %1366
        %v1368 = vsel %vm1355, %v1309, -inf
        %1369 = vmax.xlane.f32.xlu0 %v1368
        %v1370 = vpop.xlane.xlu0 %1369
        %v1371 = vsel %vm1355, %v1312, -inf
        %1372 = vmax.xlane.f32.xlu0 %v1371
        %v1373 = vpop.xlane.xlu0 %1372
        %v1374 = vsel %vm1355, %v1317, -inf
        %1375 = vmax.xlane.f32.xlu0 %v1374
        %v1376 = vpop.xlane.xlu0 %1375
        %v1377 = vsel %vm1355, %v1320, -inf
        %1378 = vmax.xlane.f32.xlu0 %v1377
        %v1379 = vpop.xlane.xlu0 %1378
        %v1380 = vsel %vm1355, %v1325, -inf
        %1381 = vmax.xlane.f32.xlu0 %v1380
        %v1382 = vpop.xlane.xlu0 %1381
        %v1383 = vsel %vm1355, %v1328, -inf
        %1384 = vmax.xlane.f32.xlu0 %v1383
        %v1385 = vpop.xlane.xlu0 %1384
        %v1386 = vsel %vm1355, %v1333, -inf
        %1387 = vmax.xlane.f32.xlu0 %v1386
        %v1388 = vpop.xlane.xlu0 %1387
        %v1389 = vsel %vm1355, %v1336, -inf
        %1390 = vmax.xlane.f32.xlu0 %v1389
        %v1391 = vpop.xlane.xlu0 %1390
        %v1392 = vsel %vm1355, %v1341, -inf
        %1393 = vmax.xlane.f32.xlu0 %v1392
        %v1394 = vpop.xlane.xlu0 %1393
        %v1395 = vsel %vm1355, %v1344, -inf
        %1396 = vmax.xlane.f32.xlu0 %v1395
        %v1397 = vpop.xlane.xlu0 %1396
        %v1398 = vsel %vm1355, %v1349, -inf
        %1399 = vmax.xlane.f32.xlu0 %v1398
        %v1400 = vpop.xlane.xlu0 %1399
        %v1401 = vsel %vm1355, %v1352, -inf
        %1402 = vmax.xlane.f32.xlu0 %v1401
        %v1403 = vpop.xlane.xlu0 %1402
        %v1404 = vsub.f32 %v1293, %v1358
        %v1405 = vsub.f32 %v1296, %v1361
        %v1406 = vsub.f32 %v1301, %v1364
        %v1407 = vsub.f32 %v1304, %v1367
        %v1408 = vsub.f32 %v1309, %v1370
        %v1409 = vsub.f32 %v1312, %v1373
        %v1410 = vsub.f32 %v1317, %v1376
        %v1411 = vsub.f32 %v1320, %v1379
        %v1412 = vsub.f32 %v1325, %v1382
        %v1413 = vsub.f32 %v1328, %v1385
        %v1414 = vsub.f32 %v1333, %v1388
        %v1415 = vsub.f32 %v1336, %v1391
        %v1416 = vsub.f32 %v1341, %v1394
        %v1417 = vsub.f32 %v1344, %v1397
        %v1418 = vsub.f32 %v1349, %v1400
        %v1419 = vsub.f32 %v1352, %v1403
        %v1420 = vmul.f32 %v1404, 1.442695
        %v1421 = vpow.pop %v1420
        %v1422 = vmul.f32 %v1405, 1.442695
        %v1423 = vpow.pop %v1422
        %v1424 = vmul.f32 %v1406, 1.442695
        %v1425 = vpow.pop %v1424
        %v1426 = vmul.f32 %v1407, 1.442695
        %v1427 = vpow.pop %v1426
        %v1428 = vmul.f32 %v1408, 1.442695
        %v1429 = vpow.pop %v1428
        %v1430 = vmul.f32 %v1409, 1.442695
        %v1431 = vpow.pop %v1430
        %v1432 = vmul.f32 %v1410, 1.442695
        %v1433 = vpow.pop %v1432
        %v1434 = vmul.f32 %v1411, 1.442695
        %v1435 = vpow.pop %v1434
        %v1436 = vmul.f32 %v1412, 1.442695
        %v1437 = vpow.pop %v1436
        %v1438 = vmul.f32 %v1413, 1.442695
        %v1439 = vpow.pop %v1438
        %v1440 = vmul.f32 %v1414, 1.442695
        %v1441 = vpow.pop %v1440
        %v1442 = vmul.f32 %v1415, 1.442695
        %v1443 = vpow.pop %v1442
        %v1444 = vmul.f32 %v1416, 1.442695
        %v1445 = vpow.pop %v1444
        %v1446 = vmul.f32 %v1417, 1.442695
        %v1447 = vpow.pop %v1446
        %v1448 = vmul.f32 %v1418, 1.442695
        %v1449 = vpow.pop %v1448
        %v1450 = vmul.f32 %v1419, 1.442695
        %v1451 = vpow.pop %v1450
        %v1452 = vld [vmem:[%s9] sm:$0xff]
        %v1453 = vld [vmem:[%s9 + $0x8] sm:$0xff]
        %v1454 = vld [vmem:[%s9 + $0x10] sm:$0xff]
        %v1455 = vld [vmem:[%s9 + $0x18] sm:$0xff]
        %v1456 = vld [vmem:[%s9 + $0x20] sm:$0xff]
        %v1457 = vld [vmem:[%s9 + $0x28] sm:$0xff]
        %v1458 = vld [vmem:[%s9 + $0x30] sm:$0xff]
        %v1459 = vld [vmem:[%s9 + $0x38] sm:$0xff]
        %v1461 = vsel %vm1355, %v1421, 0
        %v1464 = vsel %vm1355, %v1423, 0
        %v1467 = vsel %vm1355, %v1425, 0
        %v1470 = vsel %vm1355, %v1427, 0
        %v1473 = vsel %vm1355, %v1429, 0
        %v1476 = vsel %vm1355, %v1431, 0
        %v1479 = vsel %vm1355, %v1433, 0
        %v1482 = vsel %vm1355, %v1435, 0
        %v1485 = vsel %vm1355, %v1437, 0
        %v1488 = vsel %vm1355, %v1439, 0
        %v1491 = vsel %vm1355, %v1441, 0
        %v1494 = vsel %vm1355, %v1443, 0
        %v1497 = vsel %vm1355, %v1445, 0
        %v1500 = vsel %vm1355, %v1447, 0
        %v1503 = vsel %vm1355, %v1449, 0
        %v1506 = vsel %vm1355, %v1451, 0
        %1508 = vmatprep.subr.mxu0 0.0
        %1509 = vmatpush1.msra.mxu0 0.0
        %1510 = vmatprep.subr.mxu0 0.0
        %1511 = vmatpush1.msra.mxu0 0.0
        %1512 = vmatprep.subr.mxu0 0.0
        %1513 = vmatpush1.msra.mxu0 0.0
        %1514 = vmatprep.subr.mxu0 0.0
        %1515 = vmatpush1.msra.mxu0 0.0
        %1516 = vmatprep.subr.mxu0 0.0
        %1517 = vmatpush1.msra.mxu0 0.0
        %1518 = vmatprep.subr.mxu0 0.0
        %1519 = vmatpush1.msra.mxu0 0.0
        %1520 = vmatprep.subr.mxu0 0.0
        %1521 = vmatpush1.msra.mxu0 0.0
        %1522 = vmatprep.subr.mxu0 0.0
        %1523 = vmatpush1.msra.mxu0 0.0
        %1524 = vmatprep.subr.mxu0 0.0
        %1525 = vmatpush1.msra.mxu0 %v1459
        %1526 = vmatprep.subr.mxu0 0.0
        %1527 = vmatpush1.msra.mxu0 %v1458
        %1528 = vmatprep.subr.mxu0 0.0
        %1529 = vmatpush1.msra.mxu0 %v1457
        %1530 = vmatprep.subr.mxu0 0.0
        %1531 = vmatpush1.msra.mxu0 %v1456
        %1532 = vmatprep.subr.mxu0 0.0
        %1533 = vmatpush1.msra.mxu0 %v1455
        %1534 = vmatprep.subr.mxu0 0.0
        %1535 = vmatpush1.msra.mxu0 %v1454
        %1536 = vmatprep.subr.mxu0 0.0
        %1537 = vmatpush1.msra.mxu0 %v1453
        %1538 = vmatprep.subr.mxu0 0.0
        %1539 = vmatpush1.msra.mxu0 %v1452
        %1540 = vmatprep.subr.mxu0 0.0
        %1541 = vmatpush2.msra.mxu0 0.0
        %1542 = vmatprep.subr.mxu0 0.0
        %1543 = vmatpush2.msra.mxu0 0.0
        %1544 = vmatprep.subr.mxu0 0.0
        %1545 = vmatpush2.msra.mxu0 0.0
        %1546 = vmatprep.subr.mxu0 0.0
        %1547 = vmatpush2.msra.mxu0 0.0
        %1548 = vmatprep.subr.mxu0 0.0
        %1549 = vmatpush2.msra.mxu0 0.0
        %1550 = vmatprep.subr.mxu0 0.0
        %1551 = vmatpush2.msra.mxu0 0.0
        %1552 = vmatprep.subr.mxu0 0.0
        %1553 = vmatpush2.msra.mxu0 0.0
        %1554 = vmatprep.subr.mxu0 0.0
        %1555 = vmatpush2.msra.mxu0 0.0
        %1556 = vmatprep.subr.mxu0 0.0
        %1557 = vmatpush2.msra.mxu0 0.0
        %1558 = vmatprep.subr.mxu0 0.0
        %1559 = vmatpush2.msra.mxu0 0.0
        %1560 = vmatprep.subr.mxu0 0.0
        %1561 = vmatpush2.msra.mxu0 0.0
        %1562 = vmatprep.subr.mxu0 0.0
        %1563 = vmatpush2.msra.mxu0 0.0
        %1564 = vmatprep.subr.mxu0 0.0
        %1565 = vmatpush2.msra.mxu0 0.0
        %1566 = vmatprep.subr.mxu0 0.0
        %1567 = vmatpush2.msra.mxu0 0.0
        %1568 = vmatprep.subr.mxu0 0.0
        %1569 = vmatpush2.msra.mxu0 0.0
        %1570 = vmatprep.subr.mxu0 0.0
        %1571 = vmatpush2.msra.mxu0 0.0
        %1572 = vmatprep.mubr.f32.mxu0 0.0
        %1573 = vmatmul.mubr.f32.gmra.mxu0 %v1461
        %v1574 = vpop.f32.mrf.mxu0
        %v1575 = vadd.f32 0.0, %v1574
        %v1576 = vpop.f32.mrf.mxu0
        %1577 = vmatprep.mubr.f32.mxu0 0.0
        %1578 = vmatmul.mubr.f32.gmra.mxu0 %v1464
        %v1579 = vpop.f32.mrf.mxu0
        %v1580 = vadd.f32 0.0, %v1579
        %v1581 = vpop.f32.mrf.mxu0
        %1582 = vmatprep.mubr.f32.mxu0 0.0
        %1583 = vmatmul.mubr.f32.gmra.mxu0 %v1467
        %v1584 = vpop.f32.mrf.mxu0
        %v1585 = vadd.f32 0.0, %v1584
        %v1586 = vpop.f32.mrf.mxu0
        %1587 = vmatprep.mubr.f32.mxu0 0.0
        %1588 = vmatmul.mubr.f32.gmra.mxu0 %v1470
        %v1589 = vpop.f32.mrf.mxu0
        %v1590 = vadd.f32 0.0, %v1589
        %v1591 = vpop.f32.mrf.mxu0
        %1592 = vmatprep.mubr.f32.mxu0 0.0
        %1593 = vmatmul.mubr.f32.gmra.mxu0 %v1473
        %v1594 = vpop.f32.mrf.mxu0
        %v1595 = vadd.f32 0.0, %v1594
        %v1596 = vpop.f32.mrf.mxu0
        %1597 = vmatprep.mubr.f32.mxu0 0.0
        %1598 = vmatmul.mubr.f32.gmra.mxu0 %v1476
        %v1599 = vpop.f32.mrf.mxu0
        %v1600 = vadd.f32 0.0, %v1599
        %v1601 = vpop.f32.mrf.mxu0
        %1602 = vmatprep.mubr.f32.mxu0 0.0
        %1603 = vmatmul.mubr.f32.gmra.mxu0 %v1479
        %v1604 = vpop.f32.mrf.mxu0
        %v1605 = vadd.f32 0.0, %v1604
        %v1606 = vpop.f32.mrf.mxu0
        %1607 = vmatprep.mubr.f32.mxu0 0.0
        %1608 = vmatmul.mubr.f32.gmra.mxu0 %v1482
        %v1609 = vpop.f32.mrf.mxu0
        %v1610 = vadd.f32 0.0, %v1609
        %v1611 = vpop.f32.mrf.mxu0
        %1612 = vmatprep.mubr.f32.mxu0 0.0
        %1613 = vmatmul.mubr.f32.gmra.mxu0 %v1485
        %v1614 = vpop.f32.mrf.mxu0
        %v1615 = vadd.f32 0.0, %v1614
        %v1616 = vpop.f32.mrf.mxu0
        %1617 = vmatprep.mubr.f32.mxu0 0.0
        %1618 = vmatmul.mubr.f32.gmra.mxu0 %v1488
        %v1619 = vpop.f32.mrf.mxu0
        %v1620 = vadd.f32 0.0, %v1619
        %v1621 = vpop.f32.mrf.mxu0
        %1622 = vmatprep.mubr.f32.mxu0 0.0
        %1623 = vmatmul.mubr.f32.gmra.mxu0 %v1491
        %v1624 = vpop.f32.mrf.mxu0
        %v1625 = vadd.f32 0.0, %v1624
        %v1626 = vpop.f32.mrf.mxu0
        %1627 = vmatprep.mubr.f32.mxu0 0.0
        %1628 = vmatmul.mubr.f32.gmra.mxu0 %v1494
        %v1629 = vpop.f32.mrf.mxu0
        %v1630 = vadd.f32 0.0, %v1629
        %v1631 = vpop.f32.mrf.mxu0
        %1632 = vmatprep.mubr.f32.mxu0 0.0
        %1633 = vmatmul.mubr.f32.gmra.mxu0 %v1497
        %v1634 = vpop.f32.mrf.mxu0
        %v1635 = vadd.f32 0.0, %v1634
        %v1636 = vpop.f32.mrf.mxu0
        %1637 = vmatprep.mubr.f32.mxu0 0.0
        %1638 = vmatmul.mubr.f32.gmra.mxu0 %v1500
        %v1639 = vpop.f32.mrf.mxu0
        %v1640 = vadd.f32 0.0, %v1639
        %v1641 = vpop.f32.mrf.mxu0
        %1642 = vmatprep.mubr.f32.mxu0 0.0
        %1643 = vmatmul.mubr.f32.gmra.mxu0 %v1503
        %v1644 = vpop.f32.mrf.mxu0
        %v1645 = vadd.f32 0.0, %v1644
        %v1646 = vpop.f32.mrf.mxu0
        %1647 = vmatprep.mubr.f32.mxu0 0.0
        %1648 = vmatmul.mubr.f32.gmra.mxu0 %v1506
        %v1649 = vpop.f32.mrf.mxu0
        %v1650 = vadd.f32 0.0, %v1649
        %v1651 = vpop.f32.mrf.mxu0
        %1652 = vdwg.mxu0
        %v1653 = vmax.f32 %v1575, 1e-20
        %v1654 = vmax.f32 %v1580, 1e-20
        %v1655 = vmax.f32 %v1585, 1e-20
        %v1656 = vmax.f32 %v1590, 1e-20
        %v1657 = vmax.f32 %v1595, 1e-20
        %v1658 = vmax.f32 %v1600, 1e-20
        %v1659 = vmax.f32 %v1605, 1e-20
        %v1660 = vmax.f32 %v1610, 1e-20
        %v1661 = vmax.f32 %v1615, 1e-20
        %v1662 = vmax.f32 %v1620, 1e-20
        %v1663 = vmax.f32 %v1625, 1e-20
        %v1664 = vmax.f32 %v1630, 1e-20
        %v1665 = vmax.f32 %v1635, 1e-20
        %v1666 = vmax.f32 %v1640, 1e-20
        %v1667 = vmax.f32 %v1645, 1e-20
        %v1668 = vmax.f32 %v1650, 1e-20
        %v1669 = vrcp.pop %v1653
        %v1670 = vmul.f32 1.0, %v1669
        %v1671 = vrcp.pop %v1654
        %v1672 = vmul.f32 1.0, %v1671
        %v1673 = vrcp.pop %v1655
        %v1674 = vmul.f32 1.0, %v1673
        %v1675 = vrcp.pop %v1656
        %v1676 = vmul.f32 1.0, %v1675
        %v1677 = vrcp.pop %v1657
        %v1678 = vmul.f32 1.0, %v1677
        %v1679 = vrcp.pop %v1658
        %v1680 = vmul.f32 1.0, %v1679
        %v1681 = vrcp.pop %v1659
        %v1682 = vmul.f32 1.0, %v1681
        %v1683 = vrcp.pop %v1660
        %v1684 = vmul.f32 1.0, %v1683
        %v1685 = vrcp.pop %v1661
        %v1686 = vmul.f32 1.0, %v1685
        %v1687 = vrcp.pop %v1662
        %v1688 = vmul.f32 1.0, %v1687
        %v1689 = vrcp.pop %v1663
        %v1690 = vmul.f32 1.0, %v1689
        %v1691 = vrcp.pop %v1664
        %v1692 = vmul.f32 1.0, %v1691
        %v1693 = vrcp.pop %v1665
        %v1694 = vmul.f32 1.0, %v1693
        %v1695 = vrcp.pop %v1666
        %v1696 = vmul.f32 1.0, %v1695
        %v1697 = vrcp.pop %v1667
        %v1698 = vmul.f32 1.0, %v1697
        %v1699 = vrcp.pop %v1668
        %v1700 = vmul.f32 1.0, %v1699
        %v1701 = vld [vmem:[%s10] sm:$0xff]
        %vm1702 = vcmask 64512
        %v1704 = vsel %vm1702, %v1670, 0
        %v1707 = vsel %vm1702, %v1672, 0
        %v1710 = vsel %vm1702, %v1674, 0
        %v1713 = vsel %vm1702, %v1676, 0
        %v1716 = vsel %vm1702, %v1678, 0
        %v1719 = vsel %vm1702, %v1680, 0
        %v1722 = vsel %vm1702, %v1682, 0
        %v1725 = vsel %vm1702, %v1684, 0
        %v1728 = vsel %vm1702, %v1686, 0
        %v1731 = vsel %vm1702, %v1688, 0
        %v1734 = vsel %vm1702, %v1690, 0
        %v1737 = vsel %vm1702, %v1692, 0
        %v1740 = vsel %vm1702, %v1694, 0
        %v1743 = vsel %vm1702, %v1696, 0
        %v1746 = vsel %vm1702, %v1698, 0
        %v1749 = vsel %vm1702, %v1700, 0
        %1751 = vmatprep.subr.mxu0 0.0
        %1752 = vmatpush1.msra.mxu0 0.0
        %1753 = vmatprep.subr.mxu0 0.0
        %1754 = vmatpush1.msra.mxu0 0.0
        %1755 = vmatprep.subr.mxu0 0.0
        %1756 = vmatpush1.msra.mxu0 0.0
        %1757 = vmatprep.subr.mxu0 0.0
        %1758 = vmatpush1.msra.mxu0 0.0
        %1759 = vmatprep.subr.mxu0 0.0
        %1760 = vmatpush1.msra.mxu0 0.0
        %1761 = vmatprep.subr.mxu0 0.0
        %1762 = vmatpush1.msra.mxu0 0.0
        %1763 = vmatprep.subr.mxu0 0.0
        %1764 = vmatpush1.msra.mxu0 0.0
        %1765 = vmatprep.subr.mxu0 0.0
        %1766 = vmatpush1.msra.mxu0 0.0
        %1767 = vmatprep.subr.mxu0 0.0
        %1768 = vmatpush1.msra.mxu0 0.0
        %1769 = vmatprep.subr.mxu0 0.0
        %1770 = vmatpush1.msra.mxu0 0.0
        %1771 = vmatprep.subr.mxu0 0.0
        %1772 = vmatpush1.msra.mxu0 0.0
        %1773 = vmatprep.subr.mxu0 0.0
        %1774 = vmatpush1.msra.mxu0 0.0
        %1775 = vmatprep.subr.mxu0 0.0
        %1776 = vmatpush1.msra.mxu0 0.0
        %1777 = vmatprep.subr.mxu0 0.0
        %1778 = vmatpush1.msra.mxu0 0.0
        %1779 = vmatprep.subr.mxu0 0.0
        %1780 = vmatpush1.msra.mxu0 0.0
        %1781 = vmatprep.subr.mxu0 0.0
        %1782 = vmatpush1.msra.mxu0 %v1701
        %1783 = vmatprep.subr.mxu0 0.0
        %1784 = vmatpush2.msra.mxu0 0.0
        %1785 = vmatprep.subr.mxu0 0.0
        %1786 = vmatpush2.msra.mxu0 0.0
        %1787 = vmatprep.subr.mxu0 0.0
        %1788 = vmatpush2.msra.mxu0 0.0
        %1789 = vmatprep.subr.mxu0 0.0
        %1790 = vmatpush2.msra.mxu0 0.0
        %1791 = vmatprep.subr.mxu0 0.0
        %1792 = vmatpush2.msra.mxu0 0.0
        %1793 = vmatprep.subr.mxu0 0.0
        %1794 = vmatpush2.msra.mxu0 0.0
        %1795 = vmatprep.subr.mxu0 0.0
        %1796 = vmatpush2.msra.mxu0 0.0
        %1797 = vmatprep.subr.mxu0 0.0
        %1798 = vmatpush2.msra.mxu0 0.0
        %1799 = vmatprep.subr.mxu0 0.0
        %1800 = vmatpush2.msra.mxu0 0.0
        %1801 = vmatprep.subr.mxu0 0.0
        %1802 = vmatpush2.msra.mxu0 0.0
        %1803 = vmatprep.subr.mxu0 0.0
        %1804 = vmatpush2.msra.mxu0 0.0
        %1805 = vmatprep.subr.mxu0 0.0
        %1806 = vmatpush2.msra.mxu0 0.0
        %1807 = vmatprep.subr.mxu0 0.0
        %1808 = vmatpush2.msra.mxu0 0.0
        %1809 = vmatprep.subr.mxu0 0.0
        %1810 = vmatpush2.msra.mxu0 0.0
        %1811 = vmatprep.subr.mxu0 0.0
        %1812 = vmatpush2.msra.mxu0 0.0
        %1813 = vmatprep.subr.mxu0 0.0
        %1814 = vmatpush2.msra.mxu0 0.0
        %1815 = vmatprep.mubr.f32.mxu0 0.0
        %1816 = vmatmul.mubr.f32.gmra.mxu0 %v1704
        %v1817 = vpop.f32.mrf.mxu0
        %v1818 = vadd.f32 0.0, %v1817
        %v1819 = vpop.f32.mrf.mxu0
        %1820 = vmatprep.mubr.f32.mxu0 0.0
        %1821 = vmatmul.mubr.f32.gmra.mxu0 %v1707
        %v1822 = vpop.f32.mrf.mxu0
        %v1823 = vadd.f32 0.0, %v1822
        %v1824 = vpop.f32.mrf.mxu0
        %1825 = vmatprep.mubr.f32.mxu0 0.0
        %1826 = vmatmul.mubr.f32.gmra.mxu0 %v1710
        %v1827 = vpop.f32.mrf.mxu0
        %v1828 = vadd.f32 0.0, %v1827
        %v1829 = vpop.f32.mrf.mxu0
        %1830 = vmatprep.mubr.f32.mxu0 0.0
        %1831 = vmatmul.mubr.f32.gmra.mxu0 %v1713
        %v1832 = vpop.f32.mrf.mxu0
        %v1833 = vadd.f32 0.0, %v1832
        %v1834 = vpop.f32.mrf.mxu0
        %1835 = vmatprep.mubr.f32.mxu0 0.0
        %1836 = vmatmul.mubr.f32.gmra.mxu0 %v1716
        %v1837 = vpop.f32.mrf.mxu0
        %v1838 = vadd.f32 0.0, %v1837
        %v1839 = vpop.f32.mrf.mxu0
        %1840 = vmatprep.mubr.f32.mxu0 0.0
        %1841 = vmatmul.mubr.f32.gmra.mxu0 %v1719
        %v1842 = vpop.f32.mrf.mxu0
        %v1843 = vadd.f32 0.0, %v1842
        %v1844 = vpop.f32.mrf.mxu0
        %1845 = vmatprep.mubr.f32.mxu0 0.0
        %1846 = vmatmul.mubr.f32.gmra.mxu0 %v1722
        %v1847 = vpop.f32.mrf.mxu0
        %v1848 = vadd.f32 0.0, %v1847
        %v1849 = vpop.f32.mrf.mxu0
        %1850 = vmatprep.mubr.f32.mxu0 0.0
        %1851 = vmatmul.mubr.f32.gmra.mxu0 %v1725
        %v1852 = vpop.f32.mrf.mxu0
        %v1853 = vadd.f32 0.0, %v1852
        %v1854 = vpop.f32.mrf.mxu0
        %1855 = vmatprep.mubr.f32.mxu0 0.0
        %1856 = vmatmul.mubr.f32.gmra.mxu0 %v1728
        %v1857 = vpop.f32.mrf.mxu0
        %v1858 = vadd.f32 0.0, %v1857
        %v1859 = vpop.f32.mrf.mxu0
        %1860 = vmatprep.mubr.f32.mxu0 0.0
        %1861 = vmatmul.mubr.f32.gmra.mxu0 %v1731
        %v1862 = vpop.f32.mrf.mxu0
        %v1863 = vadd.f32 0.0, %v1862
        %v1864 = vpop.f32.mrf.mxu0
        %1865 = vmatprep.mubr.f32.mxu0 0.0
        %1866 = vmatmul.mubr.f32.gmra.mxu0 %v1734
        %v1867 = vpop.f32.mrf.mxu0
        %v1868 = vadd.f32 0.0, %v1867
        %v1869 = vpop.f32.mrf.mxu0
        %1870 = vmatprep.mubr.f32.mxu0 0.0
        %1871 = vmatmul.mubr.f32.gmra.mxu0 %v1737
        %v1872 = vpop.f32.mrf.mxu0
        %v1873 = vadd.f32 0.0, %v1872
        %v1874 = vpop.f32.mrf.mxu0
        %1875 = vmatprep.mubr.f32.mxu0 0.0
        %1876 = vmatmul.mubr.f32.gmra.mxu0 %v1740
        %v1877 = vpop.f32.mrf.mxu0
        %v1878 = vadd.f32 0.0, %v1877
        %v1879 = vpop.f32.mrf.mxu0
        %1880 = vmatprep.mubr.f32.mxu0 0.0
        %1881 = vmatmul.mubr.f32.gmra.mxu0 %v1743
        %v1882 = vpop.f32.mrf.mxu0
        %v1883 = vadd.f32 0.0, %v1882
        %v1884 = vpop.f32.mrf.mxu0
        %1885 = vmatprep.mubr.f32.mxu0 0.0
        %1886 = vmatmul.mubr.f32.gmra.mxu0 %v1746
        %v1887 = vpop.f32.mrf.mxu0
        %v1888 = vadd.f32 0.0, %v1887
        %v1889 = vpop.f32.mrf.mxu0
        %1890 = vmatprep.mubr.f32.mxu0 0.0
        %1891 = vmatmul.mubr.f32.gmra.mxu0 %v1749
        %v1892 = vpop.f32.mrf.mxu0
        %v1893 = vadd.f32 0.0, %v1892
        %v1894 = vpop.f32.mrf.mxu0
        %1895 = vdwg.mxu0
        %v1896 = vmul.f32 %v1421, %v1818
        %v1897 = vmul.f32 %v1423, %v1823
        %v1898 = vmul.f32 %v1425, %v1828
        %v1899 = vmul.f32 %v1427, %v1833
        %v1900 = vmul.f32 %v1429, %v1838
        %v1901 = vmul.f32 %v1431, %v1843
        %v1902 = vmul.f32 %v1433, %v1848
        %v1903 = vmul.f32 %v1435, %v1853
        %v1904 = vmul.f32 %v1437, %v1858
        %v1905 = vmul.f32 %v1439, %v1863
        %v1906 = vmul.f32 %v1441, %v1868
        %v1907 = vmul.f32 %v1443, %v1873
        %v1908 = vmul.f32 %v1445, %v1878
        %v1909 = vmul.f32 %v1447, %v1883
        %v1910 = vmul.f32 %v1449, %v1888
        %v1911 = vmul.f32 %v1451, %v1893
        %v1912 = vpack.c.bf16 %v1897, %v1896
        %v1913 = vpack.c.bf16 %v1899, %v1898
        %v1914 = vpack.c.bf16 %v1901, %v1900
        %v1915 = vpack.c.bf16 %v1903, %v1902
        %v1916 = vpack.c.bf16 %v1905, %v1904
        %v1917 = vpack.c.bf16 %v1907, %v1906
        %v1918 = vpack.c.bf16 %v1909, %v1908
        %v1919 = vpack.c.bf16 %v1911, %v1910
        %v1928 = vunpack.c.l.b16 %v1912
        %v1929 = vunpack.c.h.b16 %v1912
        %v1930 = vunpack.c.l.b16 %v1913
        %v1931 = vunpack.c.h.b16 %v1913
        %v1932 = vunpack.c.l.b16 %v1914
        %v1933 = vunpack.c.h.b16 %v1914
        %v1934 = vunpack.c.l.b16 %v1915
        %v1935 = vunpack.c.h.b16 %v1915
        %v1936 = vunpack.c.l.b16 %v1916
        %v1937 = vunpack.c.h.b16 %v1916
        %v1938 = vunpack.c.l.b16 %v1917
        %v1939 = vunpack.c.h.b16 %v1917
        %v1940 = vunpack.c.l.b16 %v1918
        %v1941 = vunpack.c.h.b16 %v1918
        %v1942 = vunpack.c.l.b16 %v1919
        %v1943 = vunpack.c.h.b16 %v1919
        %v1944 = vpack.c.b16 %v1928, %v1928
        %v1945 = vpack.c.b16 %v1929, %v1929
        %v1946 = vpack.c.b16 %v1930, %v1930
        %v1947 = vpack.c.b16 %v1931, %v1931
        %v1948 = vpack.c.b16 %v1932, %v1932
        %v1949 = vpack.c.b16 %v1933, %v1933
        %v1950 = vpack.c.b16 %v1934, %v1934
        %v1951 = vpack.c.b16 %v1935, %v1935
        %v1952 = vpack.c.b16 %v1936, %v1936
        %v1953 = vpack.c.b16 %v1937, %v1937
        %v1954 = vpack.c.b16 %v1938, %v1938
        %v1955 = vpack.c.b16 %v1939, %v1939
        %v1956 = vpack.c.b16 %v1940, %v1940
        %v1957 = vpack.c.b16 %v1941, %v1941
        %v1958 = vpack.c.b16 %v1942, %v1942
        %v1959 = vpack.c.b16 %v1943, %v1943
        %vm1976 = vcmask 519168
        %1977 = vst.msk [vmem:[%s528] sm:$0xf] %vm1976, %v1944
        %1978 = vst.msk [vmem:[%s528 + $0x4] sm:$0xf] %vm1976, %v1945
        %1979 = vst.msk [vmem:[%s528 + $0x8] sm:$0xf] %vm1976, %v1946
        %1980 = vst.msk [vmem:[%s528 + $0xc] sm:$0xf] %vm1976, %v1947
        %1981 = vst.msk [vmem:[%s528 + $0x10] sm:$0xf] %vm1976, %v1948
        %1982 = vst.msk [vmem:[%s528 + $0x14] sm:$0xf] %vm1976, %v1949
        %1983 = vst.msk [vmem:[%s528 + $0x18] sm:$0xf] %vm1976, %v1950
        %1984 = vst.msk [vmem:[%s528 + $0x1c] sm:$0xf] %vm1976, %v1951
        %1985 = vst.msk [vmem:[%s528 + $0x20] sm:$0xf] %vm1976, %v1952
        %1986 = vst.msk [vmem:[%s528 + $0x24] sm:$0xf] %vm1976, %v1953
        %1987 = vst.msk [vmem:[%s528 + $0x28] sm:$0xf] %vm1976, %v1954
        %1988 = vst.msk [vmem:[%s528 + $0x2c] sm:$0xf] %vm1976, %v1955
        %1989 = vst.msk [vmem:[%s528 + $0x30] sm:$0xf] %vm1976, %v1956
        %1990 = vst.msk [vmem:[%s528 + $0x34] sm:$0xf] %vm1976, %v1957
        %1991 = vst.msk [vmem:[%s528 + $0x38] sm:$0xf] %vm1976, %v1958
        %1992 = vst.msk [vmem:[%s528 + $0x3c] sm:$0xf] %vm1976, %v1959
        %s1993 = sand.u32 %s288, 1
        %s1994 = scalar_lea.sflag [#allocation4], %s1993
        %s1995 = sand.u32 %s288, 1
        %s1996 = smul.addr %s1995, 64
        %s1997 = scalar_lea.vmem [#allocation5], %s1996
        %s1998 = sand.u32 %s314, 1
        %s1999 = scalar_lea.sflag [#allocation7], %s1998
        %s2000 = sand.u32 %s314, 1
        %s2001 = smul.addr %s2000, 128
        %s2002 = scalar_lea.vmem [#allocation6], %s2001
        %s2003 = smul.u32 16, %s34
        %p2004 = scmp.lt.s32.totalorder %s2003, 79
        %s2005 = scalar_select %p2004, %s2003, 79
        %s2006 = smul.addr %s2005, 4
        %s2007 = scalar_lea.vmem %s13, %s2006
        // Predicated region
        $region69: #{tpu_custom_call.1} parent=63 // pred_check
          %p2008 = pneg %p298
        $region70: #{tpu_custom_call.1} parent=63 // pred_check_branch
          %2010 = sbr.rel (%p2008) target = $region72
        $region71: #{tpu_custom_call.1} parent=63 // pred_region
          %s2011 = smul.u32 16, %s34
          %s2013 = ssub.s32 1024, 1024
          %2014 = vsyncadd %s1994, %s2013
          %s2015 = smul.addr %s2011, 64
          %s2016 = scalar_lea.hbm %s11, %s2015
          %s2017 = sshll.u32 %s1997, 4
          %s2018 = int_to_ptr.vmem [resolvable:$true] %s2017
          %2023 = dma.vmem_to_hbm [thread:$0]  %s2018, 1024, %s2016, %s1994, 64, 64, 4
        $region72: #{tpu_custom_call.1} parent=63 // pred_fallthru
          _
        // Predicated region
        $region73: #{tpu_custom_call.1} parent=63 // pred_check
          %p2024 = pneg %p324
        $region74: #{tpu_custom_call.1} parent=63 // pred_check_branch
          %2026 = sbr.rel (%p2024) target = $region76
        $region75: #{tpu_custom_call.1} parent=63 // pred_region
          %s2027 = smul.u32 16, %s34
          %s2029 = ssub.s32 2048, 2048
          %2030 = vsyncadd %s1999, %s2029
          %s2031 = smul.addr %s2027, 128
          %s2032 = scalar_lea.hbm %s12, %s2031
          %s2033 = sshll.u32 %s2002, 4
          %s2034 = int_to_ptr.vmem [resolvable:$true] %s2033
          %2039 = dma.vmem_to_hbm [thread:$0]  %s2034, 2048, %s2032, %s1999, 128, 128, 8
        $region76: #{tpu_custom_call.1} parent=63 // pred_fallthru
          _
        // Predicated region
        $region77: #{tpu_custom_call.1} parent=63 // pred_check
          %p2040 = pneg %p350
        $region78: #{tpu_custom_call.1} parent=63 // pred_check_branch
          %2042 = sbr.rel (%p2040) target = $region80
        $region79: #{tpu_custom_call.1} parent=63 // pred_region
          %s2043 = smul.u32 16, %s34
        $region80: #{tpu_custom_call.1} parent=63 // pred_fallthru
          _
      $region64: #{tpu_custom_call.1} parent=5 // pred_fallthru
        _
      %p2044 = scmp.le.s32.totalorder 2, %s29
      // Predicated region
      $region81: #{tpu_custom_call.1} parent=5 // pred_check
        %p2045 = pneg %p2044
      $region82: #{tpu_custom_call.1} parent=5 // pred_check_branch
        %2047 = sbr.rel (%p2045) target = $region84
      $region83: #{tpu_custom_call.1} parent=5 // pred_region
        %s2048 = ssub.s32 %s29, 2
        // Predicated region
        $region85: #{tpu_custom_call.1} parent=83 // pred_check
          %p2049 = pneg %p304
        $region86: #{tpu_custom_call.1} parent=83 // pred_check_branch
          %2051 = sbr.rel (%p2049) target = $region88
        $region87: #{tpu_custom_call.1} parent=83 // pred_region
          %s2052 = sand.u32 %s289, 1
          %s2053 = scalar_lea.sflag [#allocation4], %s2052
          %s2054 = sand.u32 %s289, 1
          %s2055 = smul.addr %s2054, 64
          %s2056 = scalar_lea.vmem [#allocation5], %s2055
          %2057 = dma.done %s2053, 1024
        $region88: #{tpu_custom_call.1} parent=83 // pred_fallthru
          _
        // Predicated region
        $region89: #{tpu_custom_call.1} parent=83 // pred_check
          %p2058 = pneg %p330
        $region90: #{tpu_custom_call.1} parent=83 // pred_check_branch
          %2060 = sbr.rel (%p2058) target = $region92
        $region91: #{tpu_custom_call.1} parent=83 // pred_region
          %s2061 = sand.u32 %s315, 1
          %s2062 = scalar_lea.sflag [#allocation7], %s2061
          %s2063 = sand.u32 %s315, 1
          %s2064 = smul.addr %s2063, 128
          %s2065 = scalar_lea.vmem [#allocation6], %s2064
          %2066 = dma.done %s2062, 2048
        $region92: #{tpu_custom_call.1} parent=83 // pred_fallthru
          _
        // Predicated region
        $region93: #{tpu_custom_call.1} parent=83 // pred_check
          %p2067 = pneg %p356
        $region94: #{tpu_custom_call.1} parent=83 // pred_check_branch
          %2069 = sbr.rel (%p2067) target = $region96
        $region95: #{tpu_custom_call.1} parent=83 // pred_region
          %s2070 = smul.u32 16, %s35
          %p2071 = scmp.lt.s32.totalorder %s2070, 79
          %s2072 = scalar_select %p2071, %s2070, 79
          %s2073 = smul.addr %s2072, 4
          %s2074 = scalar_lea.vmem %s13, %s2073
        $region96: #{tpu_custom_call.1} parent=83 // pred_fallthru
          _
      $region84: #{tpu_custom_call.1} parent=5 // pred_fallthru
        _
    $region6: #{tpu_custom_call.1} parent=1 // loop_footer
      %s33 = sadd.s32 1, %s29
    $region7: #{tpu_custom_call.1} parent=1 // loop_footer_branch
      %28 = sbr.rel target = $region3
    $region8: #{tpu_custom_call.1} parent=1 // loop_exit
      _
    %2075 = vsyncpa [#allocation3], 1
    %s2076 = scalar_lea.sflag [#allocation3], 1
    %2077 = vsyncpa %s2076, 1
    %2078 = vsyncpa [#allocation4], 1
    %s2079 = scalar_lea.sflag [#allocation4], 1
    %2080 = vsyncpa %s2079, 1
    %2081 = vsyncpa [#allocation7], 1
    %s2082 = scalar_lea.sflag [#allocation7], 1
    %2083 = vsyncpa %s2082, 1

</llo_original>
